<compile_context>
chip_gen: v5e
topology: v5e:2x2
jax: 0.10.0
libtpu: 0.0.40
codegen_flags: <defaults>
</compile_context>

<pallas_src>
import functools
import numpy as np

import jax
import jax.numpy as jnp
from jax.experimental import pallas as pl
from jax.experimental.pallas import tpu as pltpu


# ----------------------------- small utilities -----------------------------

def _nbytes(shape, dtype):
    return int(np.prod(shape)) * jnp.dtype(dtype).itemsize


def _probe_buffered():
    # pipeline_mode=pl.Buffered(1) single-buffers constant-index (resident) weight blocks,
    # halving their VMEM footprint (v7x review item).  Probe once; older Pallas versions fall
    # back to default double-buffering.
    try:
        pl.BlockSpec((8, 128), lambda i, j: (0, 0), pipeline_mode=pl.Buffered(1))
        return True
    except Exception:
        return False


_HAS_BUFFERED = _probe_buffered()
_SINGLE_BUFFER_THRESHOLD = 8 << 20   # only bother once resident weights actually matter


def _weight_spec(shape, index_map, single_buffer):
    if single_buffer and _HAS_BUFFERED:
        return pl.BlockSpec(shape, index_map, pipeline_mode=pl.Buffered(1))
    return pl.BlockSpec(shape, index_map)


def _vmem_limit(block_bytes, resident_bytes, resident_buffers, scratch_bytes=0):
    """Per-step working set: double-buffered activation blocks + resident weights (x1 or x2
    depending on buffering) + scratch + margin, clamped below physical VMEM with headroom."""
    try:
        cap = int(pltpu.get_tpu_info().vmem_capacity_bytes)   # 128 MiB v5e/v6e, 64 MiB v7x/TC
    except Exception:
        cap = 64 * 2 ** 20                                    # conservative fallback
    budget = int(cap * 0.8)                                   # leave Mosaic scratch headroom
    need = 2 * block_bytes + resident_buffers * resident_bytes + scratch_bytes + (4 << 20)
    return int(min(budget, max(32 * 2 ** 20, need)))


# ----------------------------- in-kernel helpers -----------------------------

def _layernorm(v, g, b, eps=1e-5):
    mu = jnp.mean(v, axis=-1, keepdims=True)
    var = jnp.mean((v - mu) ** 2, axis=-1, keepdims=True)
    return (v - mu) * jax.lax.rsqrt(var + eps) * g + b


def _gelu_tanh(x):
    # tanh-GELU (torch GELU(approximate='tanh')); tanh runs on the EUP so the activation cost
    # stays off the VALU path.  Differs from exact-erf GELU by <~1e-3 per element.
    c = 0.7978845608028654  # sqrt(2/pi)
    return 0.5 * x * (1.0 + jnp.tanh(c * (x + 0.044715 * x * x * x)))


def _rotate_half(x):
    # x is in per-head "half-split" layout [evens | odds]; returns [odds | evens].
    # Lane-aligned head dims use a single XLU rotation (free next to MXU/VPU work); toy
    # sub-128-lane head dims fall back to slice + concat.  Sign is folded into the sin table.
    m = x.shape[-1] // 2
    if x.shape[-1] % 128 == 0:
        return pltpu.roll(x, shift=m, axis=-1)
    return jnp.concatenate([x[:, m:], x[:, :m]], axis=-1)


# ----------------------------- kernel A: LN1 + fused QKV + RoPE -----------------------------

def qkv_rope_kernel(x_ref, ln1_g_ref, ln1_b_ref, wqkv_ref, bqkv_ref,
                    cos_ref, sin_ref, q_ref, k_ref, v_ref,
                    *, num_heads, head_dim):
    x = x_ref[0]                                               # (Ts, D) f32
    xn = _layernorm(x, ln1_g_ref[...], ln1_b_ref[...])
    xb = xn.astype(jnp.bfloat16)

    # one big (Ts, D) x (D, 3D) contraction keeps the MXU pipeline full across all heads
    qkv = (jnp.dot(xb, wqkv_ref[...], preferred_element_type=jnp.float32)
           + bqkv_ref[...])                                    # (Ts, 3D) f32, head-major packed

    cos = cos_ref[...]                                         # (Ts, Dh)
    sin = sin_ref[...]                                         # (Ts, Dh), rotate-half sign folded

    for h in range(num_heads):                                 # static loop; lane-aligned slices
        base = 3 * head_dim * h
        q_h = qkv[:, base:base + head_dim]
        k_h = qkv[:, base + head_dim:base + 2 * head_dim]
        v_h = qkv[:, base + 2 * head_dim:base + 3 * head_dim]
        q_ref[0, h] = (q_h * cos + _rotate_half(q_h) * sin).astype(q_ref.dtype)
        k_ref[0, h] = (k_h * cos + _rotate_half(k_h) * sin).astype(k_ref.dtype)
        v_ref[0, h] = v_h.astype(v_ref.dtype)


# --------------- kernel B: causal flash attention + out-proj + MLP (per layer) ---------------

def attn_mlp_kernel(x_ref, q_ref, k_ref, v_ref,
                    wo_ref, bo_ref, ln2_g_ref, ln2_b_ref,
                    w1_ref, b1_ref, w2_ref, b2_ref,
                    y_ref, m_ref, l_ref, acc_ref,
                    *, tq, tk, num_heads):
    qi = pl.program_id(0)
    kt = pl.program_id(2)

    @pl.when(kt == 0)
    def _init():
        m_ref[...] = jnp.full(m_ref.shape, -1e30, m_ref.dtype)   # finite mask value
        l_ref[...] = jnp.zeros(l_ref.shape, l_ref.dtype)
        acc_ref[...] = jnp.zeros(acc_ref.shape, acc_ref.dtype)

    def accumulate(masked):
        q = q_ref[0]                                           # (H, Tq, Dh) bf16 (scale folded)
        k = k_ref[0]                                           # (H, Tk, Dh) bf16
        v = v_ref[0]                                           # (H, Tk, Dh) bf16
        s = jnp.einsum("hqd,hkd->hqk", q, k,
                       preferred_element_type=jnp.float32)     # (H, Tq, Tk)
        if masked:  # only the diagonal tile needs the causal mask (kt < qi is fully visible)
            row = qi * tq + jax.lax.broadcasted_iota(jnp.int32, (tq, tk), 0)
            col = kt * tk + jax.lax.broadcasted_iota(jnp.int32, (tq, tk), 1)
            s = jnp.where((col <= row)[None, :, :], s, -1e30)

        m_prev = m_ref[...]                                    # (H, Tq, 1)
        m_new = jnp.maximum(m_prev, jnp.max(s, axis=-1, keepdims=True))
        alpha = jnp.exp(m_prev - m_new)
        p = jnp.exp(s - m_new)
        l_ref[...] = alpha * l_ref[...] + jnp.sum(p, axis=-1, keepdims=True)
        acc_ref[...] = alpha * acc_ref[...] + jnp.einsum(
            "hqk,hkd->hqd", p.astype(v.dtype), v,
            preferred_element_type=jnp.float32)                # (H, Tq, Dh)
        m_ref[...] = m_new

    @pl.when(kt < qi)          # fully-visible tile: no mask work at all
    def _full():
        accumulate(masked=False)

    @pl.when(kt == qi)         # diagonal tile: build + apply the causal mask
    def _diag():
        accumulate(masked=True)

    # kt > qi: fully-masked tile -> no compute, and the k/v index_map clamp means no DMA either.

    @pl.when(kt == pl.num_programs(2) - 1)
    def _finalize():
        inv_l = pl.reciprocal(l_ref[...], approx=True)         # EUP reciprocal, not VPU divide
        o = (acc_ref[...] * inv_l).astype(jnp.bfloat16)        # (H, Tq, Dh)
        # out-projection straight from the per-head accumulator layout (no head-concat relayout)
        attn = bo_ref[...]                                     # (1, D) f32
        for h in range(num_heads):
            attn = attn + jnp.dot(o[h], wo_ref[h], preferred_element_type=jnp.float32)
        x1 = x_ref[0] + attn                                   # residual (dropout_attn = identity)

        xn2 = _layernorm(x1, ln2_g_ref[...], ln2_b_ref[...])
        h1 = (jnp.dot(xn2.astype(jnp.bfloat16), w1_ref[...],
                      preferred_element_type=jnp.float32) + b1_ref[...])
        h1 = _gelu_tanh(h1)
        mlp = (jnp.dot(h1.astype(jnp.bfloat16), w2_ref[...],
                       preferred_element_type=jnp.float32) + b2_ref[...])
        y_ref[0] = x1 + mlp                                    # residual (dropout_mlp = identity)


# ----------------------------- per-layer wrapper -----------------------------

def transformer_layer(x, layer, rope_tabs, *, num_heads, seq_tile=256):
    B, S, D = x.shape
    head_dim = D // num_heads
    (ln1_g, ln1_b, wqkv, bqkv, wo, bo, ln2_g, ln2_b, w1, b1, w2, b2) = layer
    cos, sin = rope_tabs
    ts = min(seq_tile, S)
    assert S % ts == 0, "seq_len must be a multiple of the sequence tile"
    n_s = S // ts
    d_ff = w1.shape[1]

    # ---- kernel A: LayerNorm1 + fused QKV projection + RoPE ----
    a_resident = sum(_nbytes(a.shape, a.dtype) for a in (wqkv, bqkv, ln1_g, ln1_b))
    a_single = a_resident >= _SINGLE_BUFFER_THRESHOLD
    a_blocks = (_nbytes((1, ts, D), jnp.float32)
                + 2 * _nbytes((ts, head_dim), jnp.float32)
                + 3 * _nbytes((1, num_heads, ts, head_dim), jnp.bfloat16))
    a_in_specs = [
        pl.BlockSpec((1, ts, D), lambda b, si: (b, si, 0)),
        _weight_spec(ln1_g.shape, lambda b, si: (0, 0), a_single),
        _weight_spec(ln1_b.shape, lambda b, si: (0, 0), a_single),
        _weight_spec(wqkv.shape, lambda b, si: (0, 0), a_single),
        _weight_spec(bqkv.shape, lambda b, si: (0, 0), a_single),
        pl.BlockSpec((ts, head_dim), lambda b, si: (si, 0)),
        pl.BlockSpec((ts, head_dim), lambda b, si: (si, 0)),
    ]
    a_out_specs = tuple(
        pl.BlockSpec((1, num_heads, ts, head_dim), lambda b, si: (b, 0, si, 0))
        for _ in range(3))
    qkv_shapes = tuple(jax.ShapeDtypeStruct((B, num_heads, S, head_dim), jnp.bfloat16)
                       for _ in range(3))
    q, k, v = pl.pallas_call(
        functools.partial(qkv_rope_kernel, num_heads=num_heads, head_dim=head_dim),
        out_shape=qkv_shapes,
        grid=(B, n_s),
        in_specs=a_in_specs,
        out_specs=a_out_specs,
        compiler_params=pltpu.CompilerParams(
            dimension_semantics=("parallel", "parallel"),
            vmem_limit_bytes=_vmem_limit(
                a_blocks, a_resident, 1 if (a_single and _HAS_BUFFERED) else 2)),
    )(x, ln1_g, ln1_b, wqkv, bqkv, cos, sin)

    # ---- kernel B: causal flash attention (online softmax over key tiles) + Wo + MLP ----
    b_resident = sum(_nbytes(a.shape, a.dtype)
                     for a in (wo, bo, ln2_g, ln2_b, w1, b1, w2, b2))
    b_single = b_resident >= _SINGLE_BUFFER_THRESHOLD
    b_blocks = (2 * _nbytes((1, ts, D), jnp.float32)                       # x in + y out
                + 3 * _nbytes((1, num_heads, ts, head_dim), jnp.bfloat16))  # q, k, v
    b_scratch = (2 * _nbytes((num_heads, ts, 128), jnp.float32)            # m, l (lane-padded)
                 + _nbytes((num_heads, ts, head_dim), jnp.float32)          # accumulator
                 + _nbytes((ts, d_ff), jnp.float32))                        # finalize MLP interm.

    # k/v index maps clamp kt to the diagonal: fully-masked causal tiles repeat the previous
    # block index so Pallas issues no new DMA for them (their compute is skipped in-kernel).
    b_in_specs = [
        pl.BlockSpec((1, ts, D), lambda qi, b, kt: (b, qi, 0)),                        # x
        pl.BlockSpec((1, num_heads, ts, head_dim), lambda qi, b, kt: (b, 0, qi, 0)),   # q
        pl.BlockSpec((1, num_heads, ts, head_dim),
                     lambda qi, b, kt: (b, 0, jnp.minimum(kt, qi), 0)),                # k
        pl.BlockSpec((1, num_heads, ts, head_dim),
                     lambda qi, b, kt: (b, 0, jnp.minimum(kt, qi), 0)),                # v
        _weight_spec(wo.shape, lambda qi, b, kt: (0, 0, 0), b_single),
        _weight_spec(bo.shape, lambda qi, b, kt: (0, 0), b_single),
        _weight_spec(ln2_g.shape, lambda qi, b, kt: (0, 0), b_single),
        _weight_spec(ln2_b.shape, lambda qi, b, kt: (0, 0), b_single),
        _weight_spec(w1.shape, lambda qi, b, kt: (0, 0), b_single),
        _weight_spec(b1.shape, lambda qi, b, kt: (0, 0), b_single),
        _weight_spec(w2.shape, lambda qi, b, kt: (0, 0), b_single),
        _weight_spec(b2.shape, lambda qi, b, kt: (0, 0), b_single),
    ]
    # Grid order (qi, B, kt): leading parallel axis keeps both v7x TensorCores busy even at B=1;
    # the kt reduction axis stays innermost ("arbitrary") for the resident accumulator.
    y = pl.pallas_call(
        functools.partial(attn_mlp_kernel, tq=ts, tk=ts, num_heads=num_heads),
        out_shape=jax.ShapeDtypeStruct((B, S, D), jnp.float32),
        grid=(n_s, B, n_s),
        in_specs=b_in_specs,
        out_specs=pl.BlockSpec((1, ts, D), lambda qi, b, kt: (b, qi, 0)),
        scratch_shapes=[
            pltpu.VMEM((num_heads, ts, 1), jnp.float32),          # running max m
            pltpu.VMEM((num_heads, ts, 1), jnp.float32),          # running denom l
            pltpu.VMEM((num_heads, ts, head_dim), jnp.float32),   # output accumulator
        ],
        compiler_params=pltpu.CompilerParams(
            dimension_semantics=("parallel", "parallel", "arbitrary"),
            vmem_limit_bytes=_vmem_limit(
                b_blocks, b_resident, 1 if (b_single and _HAS_BUFFERED) else 2, b_scratch)),
    )(x, q, k, v, wo, bo, ln2_g, ln2_b, w1, b1, w2, b2)
    return y


# ----------------------------- final vocab projection -----------------------------

def output_proj_kernel(x_ref, w_ref, b_ref, o_ref):
    o_ref[...] = (jnp.dot(x_ref[...], w_ref[...],
                          preferred_element_type=jnp.float32) + b_ref[...])


def output_projection(x2d_bf16, w, b, *, row_tile=512, vocab_tile=1024):
    R, D = x2d_bf16.shape
    V = w.shape[1]
    tr = min(row_tile, R)
    tv = min(vocab_tile, V)
    assert R % tr == 0 and V % tv == 0
    block_bytes = (_nbytes((tr, D), jnp.bfloat16) + _nbytes((D, tv), jnp.bfloat16)
                   + _nbytes((1, tv), jnp.float32) + _nbytes((tr, tv), jnp.float32))
    return pl.pallas_call(
        output_proj_kernel,
        out_shape=jax.ShapeDtypeStruct((R, V), jnp.float32),
        grid=(R // tr, V // tv),
        in_specs=[pl.BlockSpec((tr, D), lambda i, j: (i, 0)),
                  pl.BlockSpec((D, tv), lambda i, j: (0, j)),
                  pl.BlockSpec((1, tv), lambda i, j: (0, j))],
        out_specs=pl.BlockSpec((tr, tv), lambda i, j: (i, j)),
        compiler_params=pltpu.CompilerParams(
            dimension_semantics=("parallel", "parallel"),
            vmem_limit_bytes=_vmem_limit(block_bytes, 0, 2)),
    )(x2d_bf16, w, b)


# ----------------------------- parameter / table setup (glue) -----------------------------

def make_rope_tables(seq_len, head_dim, base):
    # Half-split layout tables (S, Dh):  cos = [cos|cos],  sin = [-sin|sin]  (rotate-half sign
    # pre-folded).  The matching de-interleave permutation is folded into Wq/Wk.
    inv_freq = base ** (-np.arange(0, head_dim, 2, dtype=np.float32) / head_dim)   # (Dh/2,)
    pos = np.arange(seq_len, dtype=np.float32)
    freqs = np.einsum("i,j->ij", pos, inv_freq)                                    # (S, Dh/2)
    cos = np.concatenate([np.cos(freqs), np.cos(freqs)], axis=-1).astype(np.float32)
    sin = np.concatenate([-np.sin(freqs), np.sin(freqs)], axis=-1).astype(np.float32)
    return jnp.asarray(cos), jnp.asarray(sin)


def init_params(key, *, vocab, d_model, n_heads, n_layers, d_ff):
    # torch-equivalent layout: linear weights stored as (in_features, out_features) = W^T.
    keys = jax.random.split(key, 1 + n_layers)
    emb = jax.random.normal(keys[0], (vocab, d_model), jnp.float32) * d_model ** -0.5

    def linear(k, fan_in, fan_out):
        bound = 1.0 / np.sqrt(fan_in)
        w = jax.random.uniform(k, (fan_in, fan_out), jnp.float32, -bound, bound)
        b = jax.random.uniform(jax.random.fold_in(k, 1), (1, fan_out),
                               jnp.float32, -bound, bound)
        return w, b

    layers = []
    for i in range(n_layers):
        ks = jax.random.split(keys[1 + i], 6)
        wq, bq = linear(ks[0], d_model, d_model)
        wk, bk = linear(ks[1], d_model, d_model)
        wv, bv = linear(ks[2], d_model, d_model)
        wo, bo = linear(ks[3], d_model, d_model)
        w1, b1 = linear(ks[4], d_model, d_ff)
        w2, b2 = linear(ks[5], d_ff, d_model)
        ln1_g = jnp.ones((1, d_model), jnp.float32)
        ln1_b = jnp.zeros((1, d_model), jnp.float32)
        ln2_g = jnp.ones((1, d_model), jnp.float32)
        ln2_b = jnp.zeros((1, d_model), jnp.float32)
        layers.append((ln1_g, ln1_b, wq, bq, wk, bk, wv, bv, wo, bo,
                       ln2_g, ln2_b, w1, b1, w2, b2))

    ko = jax.random.fold_in(key, 123)
    w_out, b_out = linear(ko, d_model, vocab)
    return dict(emb=emb, layers=layers, w_out=w_out, b_out=b_out)


def prepare_params(raw, *, num_heads):
    """Fold the RoPE de-interleave permutation into Wq/Wk and the softmax scale into Wq/bq,
    pack QKV head-major into a single (D, 3D) matrix, reshape Wo to (H, Dh, D) per-head slabs,
    and cast matmul weights to bf16 (biases / LN params stay f32)."""
    d_model = raw["layers"][0][2].shape[0]
    head_dim = d_model // num_heads
    scale = head_dim ** -0.5
    perm = np.concatenate([np.arange(0, head_dim, 2), np.arange(1, head_dim, 2)])
    cols = np.concatenate([h * head_dim + perm for h in range(num_heads)])

    def per_head(w):          # (D, D) -> (H, D, Dh)
        return jnp.transpose(w.reshape(d_model, num_heads, head_dim), (1, 0, 2))

    layers = []
    for (ln1_g, ln1_b, wq, bq, wk, bk, wv, bv, wo, bo,
         ln2_g, ln2_b, w1, b1, w2, b2) in raw["layers"]:
        wq_p, bq_p = wq[:, cols] * scale, bq[:, cols] * scale     # fold softmax scale into q
        wk_p, bk_p = wk[:, cols], bk[:, cols]
        # head-major packing: per head, columns [q_h | k_h | v_h] contiguous -> (D, 3D)
        wqkv = jnp.concatenate([per_head(wq_p), per_head(wk_p), per_head(wv)],
                               axis=-1)                           # (H, D, 3Dh)
        wqkv = jnp.transpose(wqkv, (1, 0, 2)).reshape(
            d_model, 3 * d_model).astype(jnp.bfloat16)            # (D, 3D) bf16
        bqkv = jnp.concatenate([bq_p.reshape(num_heads, 1, head_dim),
                                bk_p.reshape(num_heads, 1, head_dim),
                                bv.reshape(num_heads, 1, head_dim)],
                               axis=-1).reshape(1, 3 * d_model)   # (1, 3D) f32
        wo_h = wo.reshape(num_heads, head_dim, d_model).astype(jnp.bfloat16)   # (H, Dh, D)
        layers.append((ln1_g, ln1_b, wqkv, bqkv, wo_h, bo, ln2_g, ln2_b,
                       w1.astype(jnp.bfloat16), b1, w2.astype(jnp.bfloat16), b2))
    return dict(emb=raw["emb"], layers=layers,
                w_out=raw["w_out"].astype(jnp.bfloat16), b_out=raw["b_out"])


# ----------------------------- forward pass -----------------------------

def multilayer_transformer_forward(tokens, params, rope_tabs, *, num_heads):
    # token embedding gather + dropout_emb (identity in eval) kept as JAX glue.
    x = jnp.take(params["emb"], tokens, axis=0)                   # (B, S, D) f32
    for layer in params["layers"]:
        x = transformer_layer(x, layer, rope_tabs, num_heads=num_heads)
    B, S, D = x.shape
    x2d_bf16 = x.reshape(B * S, D).astype(jnp.bfloat16)           # cast once in the wrapper
    logits = output_projection(x2d_bf16, params["w_out"], params["b_out"])
    return logits.reshape(B, S, -1)


# ----------------------------- pure-JAX f32 reference (PyTorch semantics) -----------------------------

def reference_forward(tokens, raw, *, num_heads, rope_base):
    x = jnp.take(raw["emb"], tokens, axis=0)
    B, S, D = x.shape
    Dh = D // num_heads

    def rope(t):   # t: (B, H, S, Dh), interleaved-pair rotation like the torch module
        pos = jnp.arange(S, dtype=jnp.float32)
        inv_freq = rope_base ** (-jnp.arange(0, Dh, 2, dtype=jnp.float32) / Dh)
        ang = jnp.einsum("i,j->ij", pos, inv_freq)
        sin, cos = jnp.sin(ang), jnp.cos(ang)
        te, to = t[..., 0::2], t[..., 1::2]
        re = te * cos - to * sin
        ro = te * sin + to * cos
        return jnp.stack([re, ro], axis=-1).reshape(t.shape)

    def ln(v, g, b):
        mu = v.mean(-1, keepdims=True)
        var = ((v - mu) ** 2).mean(-1, keepdims=True)
        return (v - mu) / jnp.sqrt(var + 1e-5) * g + b

    for (ln1_g, ln1_b, wq, bq, wk, bk, wv, bv, wo, bo,
         ln2_g, ln2_b, w1, b1, w2, b2) in raw["layers"]:
        xn = ln(x, ln1_g, ln1_b)
        q = (xn @ wq + bq).reshape(B, S, num_heads, Dh).transpose(0, 2, 1, 3)
        k = (xn @ wk + bk).reshape(B, S, num_heads, Dh).transpose(0, 2, 1, 3)
        v = (xn @ wv + bv).reshape(B, S, num_heads, Dh).transpose(0, 2, 1, 3)
        q, k = rope(q), rope(k)
        scores = jnp.einsum("bhqd,bhkd->bhqk", q, k) * Dh ** -0.5
        mask = jnp.tril(jnp.ones((S, S), bool))
        scores = jnp.where(mask, scores, -jnp.inf)
        attn_w = jax.nn.softmax(scores, axis=-1)
        o = jnp.einsum("bhqk,bhkd->bhqd", attn_w, v)
        o = o.transpose(0, 2, 1, 3).reshape(B, S, D)
        x = x + (o @ wo + bo)
        xn2 = ln(x, ln2_g, ln2_b)
        h = jax.nn.gelu(xn2 @ w1 + b1, approximate=False)   # torch nn.GELU() default (erf)
        x = x + (h @ w2 + b2)
    return x @ raw["w_out"] + raw["b_out"]


# ----------------------------- main -----------------------------

if __name__ == "__main__":
    batch, seq_len = 2, 8
    d_model, n_heads, n_layers, vocab = 32, 4, 2, 64
    d_ff = 4 * d_model
    rope_base = 10000.0

    key = jax.random.PRNGKey(0)
    pkey, tkey = jax.random.split(key)
    raw = init_params(pkey, vocab=vocab, d_model=d_model, n_heads=n_heads,
                      n_layers=n_layers, d_ff=d_ff)
    params = prepare_params(raw, num_heads=n_heads)
    rope_tabs = make_rope_tables(seq_len, d_model // n_heads, rope_base)
    tokens = jax.random.randint(tkey, (batch, seq_len), 0, vocab, dtype=jnp.int32)

    logits = multilayer_transformer_forward(tokens, params, rope_tabs, num_heads=n_heads)
    logits = jax.block_until_ready(logits)

    assert logits.shape == (batch, seq_len, vocab)
    assert bool(jnp.all(jnp.isfinite(logits)))

    # Sanity-check against a pure-JAX f32 reference of the PyTorch forward (erf-GELU, exact
    # softmax, interleaved RoPE).  Kernel uses bf16 matmuls / tanh-GELU / approx reciprocal,
    # hence the loose tolerance.
    ref = reference_forward(tokens, raw, num_heads=n_heads, rope_base=rope_base)
    np.testing.assert_allclose(np.asarray(logits), np.asarray(ref), rtol=5e-2, atol=5e-2)

    print("KERNEL_OK")
</pallas_src>

<mosaic_0001>
module attributes {stable_mosaic.version = 11 : i64} {
  func.func @qkv_rope_kernel(%arg0: i32, %arg1: i32, %arg2: memref<1x8x32xf32, #tpu.memory_space<vmem>>, %arg3: memref<1x32xf32, #tpu.memory_space<vmem>>, %arg4: memref<1x32xf32, #tpu.memory_space<vmem>>, %arg5: memref<32x96xbf16, #tpu.memory_space<vmem>>, %arg6: memref<1x96xf32, #tpu.memory_space<vmem>>, %arg7: memref<8x8xf32, #tpu.memory_space<vmem>>, %arg8: memref<8x8xf32, #tpu.memory_space<vmem>>, %arg9: memref<1x4x8x8xbf16, #tpu.memory_space<vmem>>, %arg10: memref<1x4x8x8xbf16, #tpu.memory_space<vmem>>, %arg11: memref<1x4x8x8xbf16, #tpu.memory_space<vmem>>) attributes {dimension_semantics = [#tpu.dimension_semantics<parallel>, #tpu.dimension_semantics<parallel>], iteration_bounds = array<i64: 2, 1>, scalar_prefetch = 0 : i64, scratch_operands = 0 : i64, tpu.core_type = #tpu.core_type<tc>, window_params = [{transform_indices = @transform_0, window_bounds = array<i64: 1, 8, 32>}, {pipeline_mode = #tpu.pipeline_mode<synchronous>, transform_indices = @transform_1, window_bounds = array<i64: 1, 32>}, {pipeline_mode = #tpu.pipeline_mode<synchronous>, transform_indices = @transform_2, window_bounds = array<i64: 1, 32>}, {pipeline_mode = #tpu.pipeline_mode<synchronous>, transform_indices = @transform_3, window_bounds = array<i64: 32, 96>}, {pipeline_mode = #tpu.pipeline_mode<synchronous>, transform_indices = @transform_4, window_bounds = array<i64: 1, 96>}, {transform_indices = @transform_5, window_bounds = array<i64: 8, 8>}, {transform_indices = @transform_6, window_bounds = array<i64: 8, 8>}, {transform_indices = @transform_7, window_bounds = array<i64: 1, 4, 8, 8>}, {transform_indices = @transform_8, window_bounds = array<i64: 1, 4, 8, 8>}, {transform_indices = @transform_9, window_bounds = array<i64: 1, 4, 8, 8>}]} {
    %c0 = arith.constant 0 : index
    %c0_0 = arith.constant 0 : index
    %c0_1 = arith.constant 0 : index
    %0 = vector.load %arg2[%c0, %c0_0, %c0_1] : memref<1x8x32xf32, #tpu.memory_space<vmem>>, vector<1x8x32xf32>
    %1 = vector.shape_cast %0 : vector<1x8x32xf32> to vector<8x32xf32>
    %c0_2 = arith.constant 0 : index
    %c0_3 = arith.constant 0 : index
    %2 = vector.load %arg3[%c0_2, %c0_3] : memref<1x32xf32, #tpu.memory_space<vmem>>, vector<1x32xf32>
    %c0_4 = arith.constant 0 : index
    %c0_5 = arith.constant 0 : index
    %3 = vector.load %arg4[%c0_4, %c0_5] : memref<1x32xf32, #tpu.memory_space<vmem>>, vector<1x32xf32>
    %cst = arith.constant dense<0.000000e+00> : vector<8xf32>
    %4 = vector.multi_reduction <add>, %1, %cst [1] : vector<8x32xf32> to vector<8xf32>
    %5 = vector.shape_cast %4 : vector<8xf32> to vector<8x1xf32>
    %cst_6 = arith.constant 3.200000e+01 : f32
    %6 = vector.broadcast %cst_6 : f32 to vector<8x1xf32>
    %7 = arith.divf %5, %6 : vector<8x1xf32>
    %8 = vector.broadcast %7 : vector<8x1xf32> to vector<8x32xf32>
    %9 = arith.subf %1, %8 : vector<8x32xf32>
    %10 = arith.mulf %9, %9 : vector<8x32xf32>
    %cst_7 = arith.constant dense<0.000000e+00> : vector<8xf32>
    %11 = vector.multi_reduction <add>, %10, %cst_7 [1] : vector<8x32xf32> to vector<8xf32>
    %12 = vector.shape_cast %11 : vector<8xf32> to vector<8x1xf32>
    %cst_8 = arith.constant 3.200000e+01 : f32
    %13 = vector.broadcast %cst_8 : f32 to vector<8x1xf32>
    %14 = arith.divf %12, %13 : vector<8x1xf32>
    %15 = vector.broadcast %7 : vector<8x1xf32> to vector<8x32xf32>
    %16 = arith.subf %1, %15 : vector<8x32xf32>
    %cst_9 = arith.constant 9.99999974E-6 : f32
    %17 = vector.broadcast %cst_9 : f32 to vector<8x1xf32>
    %18 = arith.addf %14, %17 : vector<8x1xf32>
    %19 = math.rsqrt %18 : vector<8x1xf32>
    %20 = vector.broadcast %19 : vector<8x1xf32> to vector<8x32xf32>
    %21 = arith.mulf %16, %20 : vector<8x32xf32>
    %22 = vector.broadcast %2 : vector<1x32xf32> to vector<8x32xf32>
    %23 = arith.mulf %21, %22 : vector<8x32xf32>
    %24 = vector.broadcast %3 : vector<1x32xf32> to vector<8x32xf32>
    %25 = arith.addf %23, %24 : vector<8x32xf32>
    %26 = arith.truncf %25 : vector<8x32xf32> to vector<8x32xbf16>
    %c0_10 = arith.constant 0 : index
    %c0_11 = arith.constant 0 : index
    %27 = vector.load %arg5[%c0_10, %c0_11] : memref<32x96xbf16, #tpu.memory_space<vmem>>, vector<32x96xbf16>
    %cst_12 = arith.constant dense<0.000000e+00> : vector<8x96xf32>
    %28 = tpu.matmul %26, %27, %cst_12 {dimension_numbers = #tpu.dot_dimension_numbers<[1], [0], [0], [1], [0, 0, 1, 1], [], []>} : vector<8x32xbf16>, vector<32x96xbf16>, vector<8x96xf32> -> vector<8x96xf32>
    %c0_13 = arith.constant 0 : index
    %c0_14 = arith.constant 0 : index
    %29 = vector.load %arg6[%c0_13, %c0_14] : memref<1x96xf32, #tpu.memory_space<vmem>>, vector<1x96xf32>
    %30 = vector.broadcast %29 : vector<1x96xf32> to vector<8x96xf32>
    %31 = arith.addf %28, %30 : vector<8x96xf32>
    %c0_15 = arith.constant 0 : index
    %c0_16 = arith.constant 0 : index
    %32 = vector.load %arg7[%c0_15, %c0_16] : memref<8x8xf32, #tpu.memory_space<vmem>>, vector<8x8xf32>
    %c0_17 = arith.constant 0 : index
    %c0_18 = arith.constant 0 : index
    %33 = vector.load %arg8[%c0_17, %c0_18] : memref<8x8xf32, #tpu.memory_space<vmem>>, vector<8x8xf32>
    %34 = vector.extract_strided_slice %31 {offsets = [0, 0], sizes = [8, 8], strides = [1, 1]} : vector<8x96xf32> to vector<8x8xf32>
    %35 = vector.extract_strided_slice %31 {offsets = [0, 8], sizes = [8, 8], strides = [1, 1]} : vector<8x96xf32> to vector<8x8xf32>
    %36 = vector.extract_strided_slice %31 {offsets = [0, 16], sizes = [8, 8], strides = [1, 1]} : vector<8x96xf32> to vector<8x8xf32>
    %37 = arith.mulf %34, %32 : vector<8x8xf32>
    %38 = vector.extract_strided_slice %34 {offsets = [0, 4], sizes = [8, 4], strides = [1, 1]} : vector<8x8xf32> to vector<8x4xf32>
    %39 = vector.extract_strided_slice %34 {offsets = [0, 0], sizes = [8, 4], strides = [1, 1]} : vector<8x8xf32> to vector<8x4xf32>
    %40 = tpu.concatenate %38, %39 in 1 : vector<8x4xf32>, vector<8x4xf32> -> vector<8x8xf32>
    %41 = arith.mulf %40, %33 : vector<8x8xf32>
    %42 = arith.addf %37, %41 : vector<8x8xf32>
    %43 = arith.truncf %42 : vector<8x8xf32> to vector<8x8xbf16>
    %c0_19 = arith.constant 0 : index
    %c0_20 = arith.constant 0 : index
    %c0_21 = arith.constant 0 : index
    %c0_22 = arith.constant 0 : index
    %44 = vector.load %arg9[%c0_19, %c0_20, %c0_21, %c0_22] : memref<1x4x8x8xbf16, #tpu.memory_space<vmem>>, vector<1x1x8x8xbf16>
    %45 = vector.shape_cast %44 : vector<1x1x8x8xbf16> to vector<8x8xbf16>
    %46 = vector.shape_cast %43 : vector<8x8xbf16> to vector<1x1x8x8xbf16>
    tpu.vector_store %arg9[%c0_19, %c0_20, %c0_21, %c0_22], %46 {strides = array<i32>} : memref<1x4x8x8xbf16, #tpu.memory_space<vmem>>, vector<1x1x8x8xbf16>,
    %47 = arith.mulf %35, %32 : vector<8x8xf32>
    %48 = vector.extract_strided_slice %35 {offsets = [0, 4], sizes = [8, 4], strides = [1, 1]} : vector<8x8xf32> to vector<8x4xf32>
    %49 = vector.extract_strided_slice %35 {offsets = [0, 0], sizes = [8, 4], strides = [1, 1]} : vector<8x8xf32> to vector<8x4xf32>
    %50 = tpu.concatenate %48, %49 in 1 : vector<8x4xf32>, vector<8x4xf32> -> vector<8x8xf32>
    %51 = arith.mulf %50, %33 : vector<8x8xf32>
    %52 = arith.addf %47, %51 : vector<8x8xf32>
    %53 = arith.truncf %52 : vector<8x8xf32> to vector<8x8xbf16>
    %c0_23 = arith.constant 0 : index
    %c0_24 = arith.constant 0 : index
    %c0_25 = arith.constant 0 : index
    %c0_26 = arith.constant 0 : index
    %54 = vector.load %arg10[%c0_23, %c0_24, %c0_25, %c0_26] : memref<1x4x8x8xbf16, #tpu.memory_space<vmem>>, vector<1x1x8x8xbf16>
    %55 = vector.shape_cast %54 : vector<1x1x8x8xbf16> to vector<8x8xbf16>
    %56 = vector.shape_cast %53 : vector<8x8xbf16> to vector<1x1x8x8xbf16>
    tpu.vector_store %arg10[%c0_23, %c0_24, %c0_25, %c0_26], %56 {strides = array<i32>} : memref<1x4x8x8xbf16, #tpu.memory_space<vmem>>, vector<1x1x8x8xbf16>,
    %57 = arith.truncf %36 : vector<8x8xf32> to vector<8x8xbf16>
    %c0_27 = arith.constant 0 : index
    %c0_28 = arith.constant 0 : index
    %c0_29 = arith.constant 0 : index
    %c0_30 = arith.constant 0 : index
    %58 = vector.load %arg11[%c0_27, %c0_28, %c0_29, %c0_30] : memref<1x4x8x8xbf16, #tpu.memory_space<vmem>>, vector<1x1x8x8xbf16>
    %59 = vector.shape_cast %58 : vector<1x1x8x8xbf16> to vector<8x8xbf16>
    %60 = vector.shape_cast %57 : vector<8x8xbf16> to vector<1x1x8x8xbf16>
    tpu.vector_store %arg11[%c0_27, %c0_28, %c0_29, %c0_30], %60 {strides = array<i32>} : memref<1x4x8x8xbf16, #tpu.memory_space<vmem>>, vector<1x1x8x8xbf16>,
    %61 = vector.extract_strided_slice %31 {offsets = [0, 24], sizes = [8, 8], strides = [1, 1]} : vector<8x96xf32> to vector<8x8xf32>
    %62 = vector.extract_strided_slice %31 {offsets = [0, 32], sizes = [8, 8], strides = [1, 1]} : vector<8x96xf32> to vector<8x8xf32>
    %63 = vector.extract_strided_slice %31 {offsets = [0, 40], sizes = [8, 8], strides = [1, 1]} : vector<8x96xf32> to vector<8x8xf32>
    %64 = arith.mulf %61, %32 : vector<8x8xf32>
    %65 = vector.extract_strided_slice %61 {offsets = [0, 4], sizes = [8, 4], strides = [1, 1]} : vector<8x8xf32> to vector<8x4xf32>
    %66 = vector.extract_strided_slice %61 {offsets = [0, 0], sizes = [8, 4], strides = [1, 1]} : vector<8x8xf32> to vector<8x4xf32>
    %67 = tpu.concatenate %65, %66 in 1 : vector<8x4xf32>, vector<8x4xf32> -> vector<8x8xf32>
    %68 = arith.mulf %67, %33 : vector<8x8xf32>
    %69 = arith.addf %64, %68 : vector<8x8xf32>
    %70 = arith.truncf %69 : vector<8x8xf32> to vector<8x8xbf16>
    %c0_31 = arith.constant 0 : index
    %c1 = arith.constant 1 : index
    %c0_32 = arith.constant 0 : index
    %c0_33 = arith.constant 0 : index
    %71 = vector.load %arg9[%c0_31, %c1, %c0_32, %c0_33] : memref<1x4x8x8xbf16, #tpu.memory_space<vmem>>, vector<1x1x8x8xbf16>
    %72 = vector.shape_cast %71 : vector<1x1x8x8xbf16> to vector<8x8xbf16>
    %73 = vector.shape_cast %70 : vector<8x8xbf16> to vector<1x1x8x8xbf16>
    tpu.vector_store %arg9[%c0_31, %c1, %c0_32, %c0_33], %73 {strides = array<i32>} : memref<1x4x8x8xbf16, #tpu.memory_space<vmem>>, vector<1x1x8x8xbf16>,
    %74 = arith.mulf %62, %32 : vector<8x8xf32>
    %75 = vector.extract_strided_slice %62 {offsets = [0, 4], sizes = [8, 4], strides = [1, 1]} : vector<8x8xf32> to vector<8x4xf32>
    %76 = vector.extract_strided_slice %62 {offsets = [0, 0], sizes = [8, 4], strides = [1, 1]} : vector<8x8xf32> to vector<8x4xf32>
    %77 = tpu.concatenate %75, %76 in 1 : vector<8x4xf32>, vector<8x4xf32> -> vector<8x8xf32>
    %78 = arith.mulf %77, %33 : vector<8x8xf32>
    %79 = arith.addf %74, %78 : vector<8x8xf32>
    %80 = arith.truncf %79 : vector<8x8xf32> to vector<8x8xbf16>
    %c0_34 = arith.constant 0 : index
    %c1_35 = arith.constant 1 : index
    %c0_36 = arith.constant 0 : index
    %c0_37 = arith.constant 0 : index
    %81 = vector.load %arg10[%c0_34, %c1_35, %c0_36, %c0_37] : memref<1x4x8x8xbf16, #tpu.memory_space<vmem>>, vector<1x1x8x8xbf16>
    %82 = vector.shape_cast %81 : vector<1x1x8x8xbf16> to vector<8x8xbf16>
    %83 = vector.shape_cast %80 : vector<8x8xbf16> to vector<1x1x8x8xbf16>
    tpu.vector_store %arg10[%c0_34, %c1_35, %c0_36, %c0_37], %83 {strides = array<i32>} : memref<1x4x8x8xbf16, #tpu.memory_space<vmem>>, vector<1x1x8x8xbf16>,
    %84 = arith.truncf %63 : vector<8x8xf32> to vector<8x8xbf16>
    %c0_38 = arith.constant 0 : index
    %c1_39 = arith.constant 1 : index
    %c0_40 = arith.constant 0 : index
    %c0_41 = arith.constant 0 : index
    %85 = vector.load %arg11[%c0_38, %c1_39, %c0_40, %c0_41] : memref<1x4x8x8xbf16, #tpu.memory_space<vmem>>, vector<1x1x8x8xbf16>
    %86 = vector.shape_cast %85 : vector<1x1x8x8xbf16> to vector<8x8xbf16>
    %87 = vector.shape_cast %84 : vector<8x8xbf16> to vector<1x1x8x8xbf16>
    tpu.vector_store %arg11[%c0_38, %c1_39, %c0_40, %c0_41], %87 {strides = array<i32>} : memref<1x4x8x8xbf16, #tpu.memory_space<vmem>>, vector<1x1x8x8xbf16>,
    %88 = vector.extract_strided_slice %31 {offsets = [0, 48], sizes = [8, 8], strides = [1, 1]} : vector<8x96xf32> to vector<8x8xf32>
    %89 = vector.extract_strided_slice %31 {offsets = [0, 56], sizes = [8, 8], strides = [1, 1]} : vector<8x96xf32> to vector<8x8xf32>
    %90 = vector.extract_strided_slice %31 {offsets = [0, 64], sizes = [8, 8], strides = [1, 1]} : vector<8x96xf32> to vector<8x8xf32>
    %91 = arith.mulf %88, %32 : vector<8x8xf32>
    %92 = vector.extract_strided_slice %88 {offsets = [0, 4], sizes = [8, 4], strides = [1, 1]} : vector<8x8xf32> to vector<8x4xf32>
    %93 = vector.extract_strided_slice %88 {offsets = [0, 0], sizes = [8, 4], strides = [1, 1]} : vector<8x8xf32> to vector<8x4xf32>
    %94 = tpu.concatenate %92, %93 in 1 : vector<8x4xf32>, vector<8x4xf32> -> vector<8x8xf32>
    %95 = arith.mulf %94, %33 : vector<8x8xf32>
    %96 = arith.addf %91, %95 : vector<8x8xf32>
    %97 = arith.truncf %96 : vector<8x8xf32> to vector<8x8xbf16>
    %c0_42 = arith.constant 0 : index
    %c2 = arith.constant 2 : index
    %c0_43 = arith.constant 0 : index
    %c0_44 = arith.constant 0 : index
    %98 = vector.load %arg9[%c0_42, %c2, %c0_43, %c0_44] : memref<1x4x8x8xbf16, #tpu.memory_space<vmem>>, vector<1x1x8x8xbf16>
    %99 = vector.shape_cast %98 : vector<1x1x8x8xbf16> to vector<8x8xbf16>
    %100 = vector.shape_cast %97 : vector<8x8xbf16> to vector<1x1x8x8xbf16>
    tpu.vector_store %arg9[%c0_42, %c2, %c0_43, %c0_44], %100 {strides = array<i32>} : memref<1x4x8x8xbf16, #tpu.memory_space<vmem>>, vector<1x1x8x8xbf16>,
    %101 = arith.mulf %89, %32 : vector<8x8xf32>
    %102 = vector.extract_strided_slice %89 {offsets = [0, 4], sizes = [8, 4], strides = [1, 1]} : vector<8x8xf32> to vector<8x4xf32>
    %103 = vector.extract_strided_slice %89 {offsets = [0, 0], sizes = [8, 4], strides = [1, 1]} : vector<8x8xf32> to vector<8x4xf32>
    %104 = tpu.concatenate %102, %103 in 1 : vector<8x4xf32>, vector<8x4xf32> -> vector<8x8xf32>
    %105 = arith.mulf %104, %33 : vector<8x8xf32>
    %106 = arith.addf %101, %105 : vector<8x8xf32>
    %107 = arith.truncf %106 : vector<8x8xf32> to vector<8x8xbf16>
    %c0_45 = arith.constant 0 : index
    %c2_46 = arith.constant 2 : index
    %c0_47 = arith.constant 0 : index
    %c0_48 = arith.constant 0 : index
    %108 = vector.load %arg10[%c0_45, %c2_46, %c0_47, %c0_48] : memref<1x4x8x8xbf16, #tpu.memory_space<vmem>>, vector<1x1x8x8xbf16>
    %109 = vector.shape_cast %108 : vector<1x1x8x8xbf16> to vector<8x8xbf16>
    %110 = vector.shape_cast %107 : vector<8x8xbf16> to vector<1x1x8x8xbf16>
    tpu.vector_store %arg10[%c0_45, %c2_46, %c0_47, %c0_48], %110 {strides = array<i32>} : memref<1x4x8x8xbf16, #tpu.memory_space<vmem>>, vector<1x1x8x8xbf16>,
    %111 = arith.truncf %90 : vector<8x8xf32> to vector<8x8xbf16>
    %c0_49 = arith.constant 0 : index
    %c2_50 = arith.constant 2 : index
    %c0_51 = arith.constant 0 : index
    %c0_52 = arith.constant 0 : index
    %112 = vector.load %arg11[%c0_49, %c2_50, %c0_51, %c0_52] : memref<1x4x8x8xbf16, #tpu.memory_space<vmem>>, vector<1x1x8x8xbf16>
    %113 = vector.shape_cast %112 : vector<1x1x8x8xbf16> to vector<8x8xbf16>
    %114 = vector.shape_cast %111 : vector<8x8xbf16> to vector<1x1x8x8xbf16>
    tpu.vector_store %arg11[%c0_49, %c2_50, %c0_51, %c0_52], %114 {strides = array<i32>} : memref<1x4x8x8xbf16, #tpu.memory_space<vmem>>, vector<1x1x8x8xbf16>,
    %115 = vector.extract_strided_slice %31 {offsets = [0, 72], sizes = [8, 8], strides = [1, 1]} : vector<8x96xf32> to vector<8x8xf32>
    %116 = vector.extract_strided_slice %31 {offsets = [0, 80], sizes = [8, 8], strides = [1, 1]} : vector<8x96xf32> to vector<8x8xf32>
    %117 = vector.extract_strided_slice %31 {offsets = [0, 88], sizes = [8, 8], strides = [1, 1]} : vector<8x96xf32> to vector<8x8xf32>
    %118 = arith.mulf %115, %32 : vector<8x8xf32>
    %119 = vector.extract_strided_slice %115 {offsets = [0, 4], sizes = [8, 4], strides = [1, 1]} : vector<8x8xf32> to vector<8x4xf32>
    %120 = vector.extract_strided_slice %115 {offsets = [0, 0], sizes = [8, 4], strides = [1, 1]} : vector<8x8xf32> to vector<8x4xf32>
    %121 = tpu.concatenate %119, %120 in 1 : vector<8x4xf32>, vector<8x4xf32> -> vector<8x8xf32>
    %122 = arith.mulf %121, %33 : vector<8x8xf32>
    %123 = arith.addf %118, %122 : vector<8x8xf32>
    %124 = arith.truncf %123 : vector<8x8xf32> to vector<8x8xbf16>
    %c0_53 = arith.constant 0 : index
    %c3 = arith.constant 3 : index
    %c0_54 = arith.constant 0 : index
    %c0_55 = arith.constant 0 : index
    %125 = vector.load %arg9[%c0_53, %c3, %c0_54, %c0_55] : memref<1x4x8x8xbf16, #tpu.memory_space<vmem>>, vector<1x1x8x8xbf16>
    %126 = vector.shape_cast %125 : vector<1x1x8x8xbf16> to vector<8x8xbf16>
    %127 = vector.shape_cast %124 : vector<8x8xbf16> to vector<1x1x8x8xbf16>
    tpu.vector_store %arg9[%c0_53, %c3, %c0_54, %c0_55], %127 {strides = array<i32>} : memref<1x4x8x8xbf16, #tpu.memory_space<vmem>>, vector<1x1x8x8xbf16>,
    %128 = arith.mulf %116, %32 : vector<8x8xf32>
    %129 = vector.extract_strided_slice %116 {offsets = [0, 4], sizes = [8, 4], strides = [1, 1]} : vector<8x8xf32> to vector<8x4xf32>
    %130 = vector.extract_strided_slice %116 {offsets = [0, 0], sizes = [8, 4], strides = [1, 1]} : vector<8x8xf32> to vector<8x4xf32>
    %131 = tpu.concatenate %129, %130 in 1 : vector<8x4xf32>, vector<8x4xf32> -> vector<8x8xf32>
    %132 = arith.mulf %131, %33 : vector<8x8xf32>
    %133 = arith.addf %128, %132 : vector<8x8xf32>
    %134 = arith.truncf %133 : vector<8x8xf32> to vector<8x8xbf16>
    %c0_56 = arith.constant 0 : index
    %c3_57 = arith.constant 3 : index
    %c0_58 = arith.constant 0 : index
    %c0_59 = arith.constant 0 : index
    %135 = vector.load %arg10[%c0_56, %c3_57, %c0_58, %c0_59] : memref<1x4x8x8xbf16, #tpu.memory_space<vmem>>, vector<1x1x8x8xbf16>
    %136 = vector.shape_cast %135 : vector<1x1x8x8xbf16> to vector<8x8xbf16>
    %137 = vector.shape_cast %134 : vector<8x8xbf16> to vector<1x1x8x8xbf16>
    tpu.vector_store %arg10[%c0_56, %c3_57, %c0_58, %c0_59], %137 {strides = array<i32>} : memref<1x4x8x8xbf16, #tpu.memory_space<vmem>>, vector<1x1x8x8xbf16>,
    %138 = arith.truncf %117 : vector<8x8xf32> to vector<8x8xbf16>
    %c0_60 = arith.constant 0 : index
    %c3_61 = arith.constant 3 : index
    %c0_62 = arith.constant 0 : index
    %c0_63 = arith.constant 0 : index
    %139 = vector.load %arg11[%c0_60, %c3_61, %c0_62, %c0_63] : memref<1x4x8x8xbf16, #tpu.memory_space<vmem>>, vector<1x1x8x8xbf16>
    %140 = vector.shape_cast %139 : vector<1x1x8x8xbf16> to vector<8x8xbf16>
    %141 = vector.shape_cast %138 : vector<8x8xbf16> to vector<1x1x8x8xbf16>
    tpu.vector_store %arg11[%c0_60, %c3_61, %c0_62, %c0_63], %141 {strides = array<i32>} : memref<1x4x8x8xbf16, #tpu.memory_space<vmem>>, vector<1x1x8x8xbf16>,
    return
  }
  func.func @transform_0(%arg0: i32, %arg1: i32) -> (i32, i32, i32) {
    %c0_i32 = arith.constant 0 : i32
    %c0_i32_0 = arith.constant 0 : i32
    return %arg0, %arg1, %c0_i32 : i32, i32, i32
  }
  func.func @transform_1(%arg0: i32, %arg1: i32) -> (i32, i32) {
    %c0_i32 = arith.constant 0 : i32
    %c0_i32_0 = arith.constant 0 : i32
    %c0_i32_1 = arith.constant 0 : i32
    return %c0_i32, %c0_i32_0 : i32, i32
  }
  func.func @transform_2(%arg0: i32, %arg1: i32) -> (i32, i32) {
    %c0_i32 = arith.constant 0 : i32
    %c0_i32_0 = arith.constant 0 : i32
    %c0_i32_1 = arith.constant 0 : i32
    return %c0_i32, %c0_i32_0 : i32, i32
  }
  func.func @transform_3(%arg0: i32, %arg1: i32) -> (i32, i32) {
    %c0_i32 = arith.constant 0 : i32
    %c0_i32_0 = arith.constant 0 : i32
    %c0_i32_1 = arith.constant 0 : i32
    return %c0_i32, %c0_i32_0 : i32, i32
  }
  func.func @transform_4(%arg0: i32, %arg1: i32) -> (i32, i32) {
    %c0_i32 = arith.constant 0 : i32
    %c0_i32_0 = arith.constant 0 : i32
    %c0_i32_1 = arith.constant 0 : i32
    return %c0_i32, %c0_i32_0 : i32, i32
  }
  func.func @transform_5(%arg0: i32, %arg1: i32) -> (i32, i32) {
    %c0_i32 = arith.constant 0 : i32
    %c0_i32_0 = arith.constant 0 : i32
    return %arg1, %c0_i32 : i32, i32
  }
  func.func @transform_6(%arg0: i32, %arg1: i32) -> (i32, i32) {
    %c0_i32 = arith.constant 0 : i32
    %c0_i32_0 = arith.constant 0 : i32
    return %arg1, %c0_i32 : i32, i32
  }
  func.func @transform_7(%arg0: i32, %arg1: i32) -> (i32, i32, i32, i32) {
    %c0_i32 = arith.constant 0 : i32
    %c0_i32_0 = arith.constant 0 : i32
    %c0_i32_1 = arith.constant 0 : i32
    return %arg0, %c0_i32, %arg1, %c0_i32_0 : i32, i32, i32, i32
  }
  func.func @transform_8(%arg0: i32, %arg1: i32) -> (i32, i32, i32, i32) {
    %c0_i32 = arith.constant 0 : i32
    %c0_i32_0 = arith.constant 0 : i32
    %c0_i32_1 = arith.constant 0 : i32
    return %arg0, %c0_i32, %arg1, %c0_i32_0 : i32, i32, i32, i32
  }
  func.func @transform_9(%arg0: i32, %arg1: i32) -> (i32, i32, i32, i32) {
    %c0_i32 = arith.constant 0 : i32
    %c0_i32_0 = arith.constant 0 : i32
    %c0_i32_1 = arith.constant 0 : i32
    return %arg0, %c0_i32, %arg1, %c0_i32_0 : i32, i32, i32, i32
  }
}

</mosaic_0001>

<llo_original>
// kernel: tpu_custom_call.1
$region0: #{tpu_custom_call.1}
  #allocation0 [shape = 'u32[]', space=smem, size = 0x4, offset = 0x4, fixed_abs, tag = 'smem constant byte address 0x4 - core index']
  #allocation1 [shape = 'u32[72,128]{1,0:T(1,128)}', space=vmem, size = 0x9000, scoped, tag = 'internal scratch']
  %s0 = inlined_call_operand.hbm [shape: f32[2,8,32], index: 0, kind: input, shape index: {}]
  %s1 = inlined_call_operand.hbm [shape: f32[1,32], index: 1, kind: input, shape index: {}]
  %s2 = inlined_call_operand.vmem [shape: f32[1,32], index: 2, kind: input, shape index: {}]
  %s3 = inlined_call_operand.hbm [shape: bf16[32,96], index: 3, kind: input, shape index: {}]
  %s4 = inlined_call_operand.vmem [shape: f32[1,96], index: 4, kind: input, shape index: {}]
  %s5 = inlined_call_operand.hbm [shape: f32[8,8], index: 5, kind: input, shape index: {}]
  %s6 = inlined_call_operand.hbm [shape: f32[8,8], index: 6, kind: input, shape index: {}]
  %s7 = inlined_call_operand.hbm [shape: bf16[2,4,8,8], index: 7, kind: output, shape index: {0}]
  %s8 = inlined_call_operand.hbm [shape: bf16[2,4,8,8], index: 8, kind: output, shape index: {1}]
  %s9 = inlined_call_operand.hbm [shape: bf16[2,4,8,8], index: 9, kind: output, shape index: {2}]
  %10 = xla_tuple %s7, %s8, %s9
  %s11 = sld [smem:[#allocation0]]
  $region97: #{tpu_custom_call.1} parent=0
    _
  %s13 = ssub.s32 1, %s11
  %s14 = scalar_select 0, %s13, %s11
  $region1: #{tpu_custom_call.1} parent=0
    #allocation2 [shape = 'u8[8192]{0}', space=vmem, size = 0x2000, scoped, tag = 'input window, operand 0']
    #allocation3 [shape = 's32[2]{0}', space=sflag, size = 0x8, scoped, tag = 'scoped memory for tpu_custom_call.1']
    #allocation4 [shape = 's32[2]{0}', space=sflag, size = 0x8, scoped, tag = 'scoped memory for tpu_custom_call.1']
    #allocation5 [shape = 'u8[512]{0}', space=vmem, size = 0x400, scoped, tag = 'input window, operand 1, single buffered']
    #allocation6 [shape = 's32[1]{0}', space=sflag, size = 0x4, scoped, tag = 'scoped memory for tpu_custom_call.1']
    #allocation7 [shape = 'u8[8192]{0}', space=vmem, size = 0x2000, scoped, tag = 'input window, operand 3, single buffered']
    #allocation8 [shape = 'u8[4096]{0}', space=vmem, size = 0x1000, scoped, tag = 'input window, operand 5, single buffered']
    #allocation9 [shape = 's32[1]{0}', space=sflag, size = 0x4, scoped, tag = 'scoped memory for tpu_custom_call.1']
    #allocation10 [shape = 'u8[4096]{0}', space=vmem, size = 0x1000, scoped, tag = 'input window, operand 6, single buffered']
    #allocation11 [shape = 'u8[16384]{0}', space=vmem, size = 0x4000, scoped, tag = 'output window, operand 0']
    #allocation12 [shape = 'u8[16384]{0}', space=vmem, size = 0x4000, scoped, tag = 'output window, operand 1']
    #allocation13 [shape = 's32[2]{0}', space=sflag, size = 0x8, scoped, tag = 'scoped memory for tpu_custom_call.1']
    #allocation14 [shape = 'u8[16384]{0}', space=vmem, size = 0x4000, scoped, tag = 'output window, operand 2']
    %15 = vsyncpa [#allocation3], 0
    %s16 = scalar_lea.sflag [#allocation3], 1
    %17 = vsyncpa %s16, 0
    %18 = vsyncpa [#allocation6], 0
    %19 = vsyncpa [#allocation9], 0
    %20 = vsyncpa [#allocation4], 0
    %s21 = scalar_lea.sflag [#allocation4], 1
    %22 = vsyncpa %s21, 0
    %23 = vsyncpa [#allocation13], 0
    %s24 = scalar_lea.sflag [#allocation13], 1
    %25 = vsyncpa %s24, 0
    loop: start=0, step=1, limit=4
    $region2: #{tpu_custom_call.1} parent=1 // loop_pre_header
      _
    $region3: #{tpu_custom_call.1} parent=1 // loop_header
      %s27 = sphi 0, %s31
      %p28 = scmp.ge.s32.totalorder %s27, 4
      %s34 = sphi 0, %s46
      %s35 = sphi 0, %s42
      %s36 = sphi 0, %s34
      %s37 = sphi 0, %s35
      %s38 = sphi 0, %s36
      %s39 = sphi 0, %s37
      %s51 = sphi 0, %s53
      %s54 = sphi 0, %s51
      %s55 = sphi 0, %s54
      %s71 = sphi 0, %s55
      %s75 = sphi 0, %s75
      %s77 = sphi 0, %s75
      %s78 = sphi 0, %s77
      %s92 = sphi 0, %s78
      %s96 = sphi 0, %s96
      %s98 = sphi 0, %s96
      %s99 = sphi 0, %s98
      %s113 = sphi 0, %s99
      %s117 = sphi 0, %s117
      %s119 = sphi 0, %s117
      %s120 = sphi 0, %s119
      %s134 = sphi 0, %s120
      %s138 = sphi 0, %s138
      %s140 = sphi 0, %s138
      %s141 = sphi 0, %s140
      %s155 = sphi 0, %s141
      %s161 = sphi 0, %s163
      %s164 = sphi 0, %s161
      %s165 = sphi 0, %s164
      %s181 = sphi 0, %s165
      %s187 = sphi 0, %s189
      %s190 = sphi 0, %s187
      %s191 = sphi 0, %s190
      %s207 = sphi 0, %s191
      %s215 = sphi 0, %s217
      %s218 = sphi 0, %s215
      %s219 = sphi 0, %s218
      %s235 = sphi 0, %s219
      %s243 = sphi 0, %s245
      %s246 = sphi 0, %s243
      %s247 = sphi 0, %s246
      %s263 = sphi 0, %s247
      %s271 = sphi 0, %s273
      %s274 = sphi 0, %s271
      %s275 = sphi 0, %s274
      %s291 = sphi 0, %s275
    $region4: #{tpu_custom_call.1} parent=1 // loop_header_branch
      %30 = sbr.rel (%p28) target = $region8
    $region5: #{tpu_custom_call.1} parent=1 // loop_body
      %s32 = ssub.s32 %s27, 1
      %s33 = ssub.s32 %s27, 2
      %s40 = sadd.s32 1, %s35
      %p41 = scmp.ge.s32.totalorder %s40, 1
      %s42 = scalar_select %p41, 0, %s40
      %s43 = sadd.s32 1, %s34
      %s44 = scalar_select %p41, %s43, %s34
      %p45 = scmp.ge.s32.totalorder %s44, 2
      %s46 = scalar_select %p45, 0, %s44
      %s47 = ssub.s32 %s34, %s46
      %s48 = ssub.s32 %s35, %s42
      %s49 = sor.u32 %s47, %s48
      %p50 = scmp.eq.s32.totalorder %s49, 0
      %s52 = sadd.s32 %s51, 1
      %s53 = scalar_select %p50, %s51, %s52
      %p56 = pneg %p50
      %p57 = scmp.eq.s32.totalorder %s27, 1
      %p58 = por %p56, %p57
      %p59 = scmp.ne.s32.totalorder %s51, %s54
      %p60 = scmp.eq.s32.totalorder %s27, 0
      %p61 = por %p59, %p60
      %p62 = scmp.ne.s32.totalorder %s51, %s54
      %p63 = scmp.eq.s32.totalorder %s32, 1
      %p64 = por %p62, %p63
      %p65 = scmp.ne.s32.totalorder %s54, %s55
      %p66 = scmp.eq.s32.totalorder %s32, 0
      %p67 = por %p65, %p66
      %p68 = scmp.ne.s32.totalorder %s54, %s55
      %p69 = scmp.eq.s32.totalorder %s33, 1
      %p70 = por %p68, %p69
      %p72 = scmp.ne.s32.totalorder %s55, %s71
      %p73 = scmp.eq.s32.totalorder %s33, 0
      %p74 = por %p72, %p73
      %s76 = sadd.s32 %s75, 1
      %p79 = scmp.eq.s32.totalorder %s27, 1
      %p80 = scmp.ne.s32.totalorder %s75, %s77
      %p81 = scmp.eq.s32.totalorder %s27, 0
      %p82 = por %p80, %p81
      %p83 = scmp.ne.s32.totalorder %s75, %s77
      %p84 = scmp.eq.s32.totalorder %s32, 1
      %p85 = por %p83, %p84
      %p86 = scmp.ne.s32.totalorder %s77, %s78
      %p87 = scmp.eq.s32.totalorder %s32, 0
      %p88 = por %p86, %p87
      %p89 = scmp.ne.s32.totalorder %s77, %s78
      %p90 = scmp.eq.s32.totalorder %s33, 1
      %p91 = por %p89, %p90
      %p93 = scmp.ne.s32.totalorder %s78, %s92
      %p94 = scmp.eq.s32.totalorder %s33, 0
      %p95 = por %p93, %p94
      %s97 = sadd.s32 %s96, 1
      %p100 = scmp.eq.s32.totalorder %s27, 1
      %p101 = scmp.ne.s32.totalorder %s96, %s98
      %p102 = scmp.eq.s32.totalorder %s27, 0
      %p103 = por %p101, %p102
      %p104 = scmp.ne.s32.totalorder %s96, %s98
      %p105 = scmp.eq.s32.totalorder %s32, 1
      %p106 = por %p104, %p105
      %p107 = scmp.ne.s32.totalorder %s98, %s99
      %p108 = scmp.eq.s32.totalorder %s32, 0
      %p109 = por %p107, %p108
      %p110 = scmp.ne.s32.totalorder %s98, %s99
      %p111 = scmp.eq.s32.totalorder %s33, 1
      %p112 = por %p110, %p111
      %p114 = scmp.ne.s32.totalorder %s99, %s113
      %p115 = scmp.eq.s32.totalorder %s33, 0
      %p116 = por %p114, %p115
      %s118 = sadd.s32 %s117, 1
      %p121 = scmp.eq.s32.totalorder %s27, 1
      %p122 = scmp.ne.s32.totalorder %s117, %s119
      %p123 = scmp.eq.s32.totalorder %s27, 0
      %p124 = por %p122, %p123
      %p125 = scmp.ne.s32.totalorder %s117, %s119
      %p126 = scmp.eq.s32.totalorder %s32, 1
      %p127 = por %p125, %p126
      %p128 = scmp.ne.s32.totalorder %s119, %s120
      %p129 = scmp.eq.s32.totalorder %s32, 0
      %p130 = por %p128, %p129
      %p131 = scmp.ne.s32.totalorder %s119, %s120
      %p132 = scmp.eq.s32.totalorder %s33, 1
      %p133 = por %p131, %p132
      %p135 = scmp.ne.s32.totalorder %s120, %s134
      %p136 = scmp.eq.s32.totalorder %s33, 0
      %p137 = por %p135, %p136
      %s139 = sadd.s32 %s138, 1
      %p142 = scmp.eq.s32.totalorder %s27, 1
      %p143 = scmp.ne.s32.totalorder %s138, %s140
      %p144 = scmp.eq.s32.totalorder %s27, 0
      %p145 = por %p143, %p144
      %p146 = scmp.ne.s32.totalorder %s138, %s140
      %p147 = scmp.eq.s32.totalorder %s32, 1
      %p148 = por %p146, %p147
      %p149 = scmp.ne.s32.totalorder %s140, %s141
      %p150 = scmp.eq.s32.totalorder %s32, 0
      %p151 = por %p149, %p150
      %p152 = scmp.ne.s32.totalorder %s140, %s141
      %p153 = scmp.eq.s32.totalorder %s33, 1
      %p154 = por %p152, %p153
      %p156 = scmp.ne.s32.totalorder %s141, %s155
      %p157 = scmp.eq.s32.totalorder %s33, 0
      %p158 = por %p156, %p157
      %s159 = ssub.s32 %s35, %s42
      %p160 = scmp.eq.s32.totalorder %s159, 0
      %s162 = sadd.s32 %s161, 1
      %s163 = scalar_select %p160, %s161, %s162
      %p166 = pneg %p160
      %p167 = scmp.eq.s32.totalorder %s27, 1
      %p168 = por %p166, %p167
      %p169 = scmp.ne.s32.totalorder %s161, %s164
      %p170 = scmp.eq.s32.totalorder %s27, 0
      %p171 = por %p169, %p170
      %p172 = scmp.ne.s32.totalorder %s161, %s164
      %p173 = scmp.eq.s32.totalorder %s32, 1
      %p174 = por %p172, %p173
      %p175 = scmp.ne.s32.totalorder %s164, %s165
      %p176 = scmp.eq.s32.totalorder %s32, 0
      %p177 = por %p175, %p176
      %p178 = scmp.ne.s32.totalorder %s164, %s165
      %p179 = scmp.eq.s32.totalorder %s33, 1
      %p180 = por %p178, %p179
      %p182 = scmp.ne.s32.totalorder %s165, %s181
      %p183 = scmp.eq.s32.totalorder %s33, 0
      %p184 = por %p182, %p183
      %s185 = ssub.s32 %s35, %s42
      %p186 = scmp.eq.s32.totalorder %s185, 0
      %s188 = sadd.s32 %s187, 1
      %s189 = scalar_select %p186, %s187, %s188
      %p192 = pneg %p186
      %p193 = scmp.eq.s32.totalorder %s27, 1
      %p194 = por %p192, %p193
      %p195 = scmp.ne.s32.totalorder %s187, %s190
      %p196 = scmp.eq.s32.totalorder %s27, 0
      %p197 = por %p195, %p196
      %p198 = scmp.ne.s32.totalorder %s187, %s190
      %p199 = scmp.eq.s32.totalorder %s32, 1
      %p200 = por %p198, %p199
      %p201 = scmp.ne.s32.totalorder %s190, %s191
      %p202 = scmp.eq.s32.totalorder %s32, 0
      %p203 = por %p201, %p202
      %p204 = scmp.ne.s32.totalorder %s190, %s191
      %p205 = scmp.eq.s32.totalorder %s33, 1
      %p206 = por %p204, %p205
      %p208 = scmp.ne.s32.totalorder %s191, %s207
      %p209 = scmp.eq.s32.totalorder %s33, 0
      %p210 = por %p208, %p209
      %s211 = ssub.s32 %s34, %s46
      %s212 = ssub.s32 %s35, %s42
      %s213 = sor.u32 %s211, %s212
      %p214 = scmp.eq.s32.totalorder %s213, 0
      %s216 = sadd.s32 %s215, 1
      %s217 = scalar_select %p214, %s215, %s216
      %p220 = pneg %p214
      %p221 = scmp.eq.s32.totalorder %s27, 1
      %p222 = por %p220, %p221
      %p223 = scmp.ne.s32.totalorder %s215, %s218
      %p224 = scmp.eq.s32.totalorder %s27, 0
      %p225 = por %p223, %p224
      %p226 = scmp.ne.s32.totalorder %s215, %s218
      %p227 = scmp.eq.s32.totalorder %s32, 1
      %p228 = por %p226, %p227
      %p229 = scmp.ne.s32.totalorder %s218, %s219
      %p230 = scmp.eq.s32.totalorder %s32, 0
      %p231 = por %p229, %p230
      %p232 = scmp.ne.s32.totalorder %s218, %s219
      %p233 = scmp.eq.s32.totalorder %s33, 1
      %p234 = por %p232, %p233
      %p236 = scmp.ne.s32.totalorder %s219, %s235
      %p237 = scmp.eq.s32.totalorder %s33, 0
      %p238 = por %p236, %p237
      %s239 = ssub.s32 %s34, %s46
      %s240 = ssub.s32 %s35, %s42
      %s241 = sor.u32 %s239, %s240
      %p242 = scmp.eq.s32.totalorder %s241, 0
      %s244 = sadd.s32 %s243, 1
      %s245 = scalar_select %p242, %s243, %s244
      %p248 = pneg %p242
      %p249 = scmp.eq.s32.totalorder %s27, 1
      %p250 = por %p248, %p249
      %p251 = scmp.ne.s32.totalorder %s243, %s246
      %p252 = scmp.eq.s32.totalorder %s27, 0
      %p253 = por %p251, %p252
      %p254 = scmp.ne.s32.totalorder %s243, %s246
      %p255 = scmp.eq.s32.totalorder %s32, 1
      %p256 = por %p254, %p255
      %p257 = scmp.ne.s32.totalorder %s246, %s247
      %p258 = scmp.eq.s32.totalorder %s32, 0
      %p259 = por %p257, %p258
      %p260 = scmp.ne.s32.totalorder %s246, %s247
      %p261 = scmp.eq.s32.totalorder %s33, 1
      %p262 = por %p260, %p261
      %p264 = scmp.ne.s32.totalorder %s247, %s263
      %p265 = scmp.eq.s32.totalorder %s33, 0
      %p266 = por %p264, %p265
      %s267 = ssub.s32 %s34, %s46
      %s268 = ssub.s32 %s35, %s42
      %s269 = sor.u32 %s267, %s268
      %p270 = scmp.eq.s32.totalorder %s269, 0
      %s272 = sadd.s32 %s271, 1
      %s273 = scalar_select %p270, %s271, %s272
      %p276 = pneg %p270
      %p277 = scmp.eq.s32.totalorder %s27, 1
      %p278 = por %p276, %p277
      %p279 = scmp.ne.s32.totalorder %s271, %s274
      %p280 = scmp.eq.s32.totalorder %s27, 0
      %p281 = por %p279, %p280
      %p282 = scmp.ne.s32.totalorder %s271, %s274
      %p283 = scmp.eq.s32.totalorder %s32, 1
      %p284 = por %p282, %p283
      %p285 = scmp.ne.s32.totalorder %s274, %s275
      %p286 = scmp.eq.s32.totalorder %s32, 0
      %p287 = por %p285, %p286
      %p288 = scmp.ne.s32.totalorder %s274, %s275
      %p289 = scmp.eq.s32.totalorder %s33, 1
      %p290 = por %p288, %p289
      %p292 = scmp.ne.s32.totalorder %s275, %s291
      %p293 = scmp.eq.s32.totalorder %s33, 0
      %p294 = por %p292, %p293
      %p295 = scmp.le.s32.totalorder 1, %s27
      %p296 = scmp.lt.s32.totalorder %s27, 3
      %p297 = pnand %p295, %p296
      %p298 = pneg %p297
      // Predicated region
      $region9: #{tpu_custom_call.1} parent=5 // pred_check
        _
      $region10: #{tpu_custom_call.1} parent=5 // pred_check_branch
        %300 = sbr.rel (%p297) target = $region12
      $region11: #{tpu_custom_call.1} parent=5 // pred_region
        %s301 = ssub.s32 %s27, 1
        // Predicated region
        $region13: #{tpu_custom_call.1} parent=11 // pred_check
          %p302 = pneg %p88
        $region14: #{tpu_custom_call.1} parent=11 // pred_check_branch
          %304 = sbr.rel (%p302) target = $region16
        $region15: #{tpu_custom_call.1} parent=11 // pred_region
          %306 = vsyncadd [#allocation6], 0
          %s308 = sshll.u32 %s1, 4
          %s309 = int_to_ptr.hbm [resolvable:$true] %s308
          %s310 = sshll.u32 [#allocation5], 4
          %s311 = int_to_ptr.vmem [resolvable:$true] %s310
          %313 = dma.hbm_to_vmem [thread:$0]  %s309, 16, %s311, [#allocation6]
        $region16: #{tpu_custom_call.1} parent=11 // pred_fallthru
          _
        // Predicated region
        $region17: #{tpu_custom_call.1} parent=11 // pred_check
          %p314 = pneg %p109
        $region18: #{tpu_custom_call.1} parent=11 // pred_check_branch
          %316 = sbr.rel (%p314) target = $region20
        $region19: #{tpu_custom_call.1} parent=11 // pred_region
          _
        $region20: #{tpu_custom_call.1} parent=11 // pred_fallthru
          _
        // Predicated region
        $region21: #{tpu_custom_call.1} parent=11 // pred_check
          %p317 = pneg %p130
        $region22: #{tpu_custom_call.1} parent=11 // pred_check_branch
          %319 = sbr.rel (%p317) target = $region24
        $region23: #{tpu_custom_call.1} parent=11 // pred_region
          %321 = vsyncadd [#allocation6], 0
          %s322 = sshll.u32 %s3, 4
          %s323 = int_to_ptr.hbm [resolvable:$true] %s322
          %s324 = sshll.u32 [#allocation7], 4
          %s325 = int_to_ptr.vmem [resolvable:$true] %s324
          %330 = dma.hbm_to_vmem [thread:$0]  %s323, 256, %s325, [#allocation6], 64, 64, 4
        $region24: #{tpu_custom_call.1} parent=11 // pred_fallthru
          _
        // Predicated region
        $region25: #{tpu_custom_call.1} parent=11 // pred_check
          %p331 = pneg %p151
        $region26: #{tpu_custom_call.1} parent=11 // pred_check_branch
          %333 = sbr.rel (%p331) target = $region28
        $region27: #{tpu_custom_call.1} parent=11 // pred_region
          _
        $region28: #{tpu_custom_call.1} parent=11 // pred_fallthru
          _
        // Predicated region
        $region29: #{tpu_custom_call.1} parent=11 // pred_check
          %p334 = pneg %p177
        $region30: #{tpu_custom_call.1} parent=11 // pred_check_branch
          %336 = sbr.rel (%p334) target = $region32
        $region31: #{tpu_custom_call.1} parent=11 // pred_region
          %338 = vsyncadd [#allocation9], 0
          %s339 = smul.addr %s37, 8
          %s340 = scalar_lea.hbm %s5, %s339
          %s342 = sshll.u32 %s340, 4
          %s343 = int_to_ptr.hbm [resolvable:$true] %s342
          %s344 = sshll.u32 [#allocation8], 4
          %s345 = int_to_ptr.vmem [resolvable:$true] %s344
          %347 = dma.hbm_to_vmem [thread:$0]  %s343, 128, %s345, [#allocation9]
        $region32: #{tpu_custom_call.1} parent=11 // pred_fallthru
          _
        // Predicated region
        $region33: #{tpu_custom_call.1} parent=11 // pred_check
          %p348 = pneg %p203
        $region34: #{tpu_custom_call.1} parent=11 // pred_check_branch
          %350 = sbr.rel (%p348) target = $region36
        $region35: #{tpu_custom_call.1} parent=11 // pred_region
          %352 = vsyncadd [#allocation9], 0
          %s353 = smul.addr %s37, 8
          %s354 = scalar_lea.hbm %s6, %s353
          %s356 = sshll.u32 %s354, 4
          %s357 = int_to_ptr.hbm [resolvable:$true] %s356
          %s358 = sshll.u32 [#allocation10], 4
          %s359 = int_to_ptr.vmem [resolvable:$true] %s358
          %361 = dma.hbm_to_vmem [thread:$0]  %s357, 128, %s359, [#allocation9]
        $region36: #{tpu_custom_call.1} parent=11 // pred_fallthru
          _
      $region12: #{tpu_custom_call.1} parent=5 // pred_fallthru
        _
      %p362 = scmp.lt.s32.totalorder %s27, 2
      // Predicated region
      $region37: #{tpu_custom_call.1} parent=5 // pred_check
        %p363 = pneg %p362
      $region38: #{tpu_custom_call.1} parent=5 // pred_check_branch
        %365 = sbr.rel (%p363) target = $region40
      $region39: #{tpu_custom_call.1} parent=5 // pred_region
        // Predicated region
        $region41: #{tpu_custom_call.1} parent=39 // pred_check
          %p366 = pneg %p61
        $region42: #{tpu_custom_call.1} parent=39 // pred_check_branch
          %368 = sbr.rel (%p366) target = $region44
        $region43: #{tpu_custom_call.1} parent=39 // pred_region
          %s369 = sand.u32 %s51, 1
          %s370 = scalar_lea.sflag [#allocation3], %s369
          %s371 = sand.u32 %s51, 1
          %s372 = smul.addr %s371, 8
          %s373 = scalar_lea.vmem [#allocation2], %s372
          %375 = vsyncadd %s370, 0
          %s376 = sadd.s32 %s35, %s34
          %s377 = smul.addr %s376, 8
          %s378 = scalar_lea.hbm %s0, %s377
          %s380 = sshll.u32 %s378, 4
          %s381 = int_to_ptr.hbm [resolvable:$true] %s380
          %s382 = sshll.u32 %s373, 4
          %s383 = int_to_ptr.vmem [resolvable:$true] %s382
          %385 = dma.hbm_to_vmem [thread:$0]  %s381, 128, %s383, %s370
        $region44: #{tpu_custom_call.1} parent=39 // pred_fallthru
          _
      $region40: #{tpu_custom_call.1} parent=5 // pred_fallthru
        _
      %p386 = scmp.le.s32.totalorder 1, %s27
      %p387 = scmp.lt.s32.totalorder %s27, 3
      %p388 = pnand %p386, %p387
      %p389 = pneg %p388
      // Predicated region
      $region45: #{tpu_custom_call.1} parent=5 // pred_check
        _
      $region46: #{tpu_custom_call.1} parent=5 // pred_check_branch
        %391 = sbr.rel (%p388) target = $region48
      $region47: #{tpu_custom_call.1} parent=5 // pred_region
        %s392 = ssub.s32 %s27, 1
        %s393 = sand.u32 %s54, 1
        %s394 = scalar_lea.sflag [#allocation3], %s393
        %s395 = sand.u32 %s54, 1
        %s396 = smul.addr %s395, 8
        %s397 = scalar_lea.vmem [#allocation2], %s396
        // Predicated region
        $region49: #{tpu_custom_call.1} parent=47 // pred_check
          %p398 = pneg %p67
        $region50: #{tpu_custom_call.1} parent=47 // pred_check_branch
          %400 = sbr.rel (%p398) target = $region52
        $region51: #{tpu_custom_call.1} parent=47 // pred_region
          %402 = dma.done %s394, 128
        $region52: #{tpu_custom_call.1} parent=47 // pred_fallthru
          _
        // Predicated region
        $region53: #{tpu_custom_call.1} parent=47 // pred_check
          %p403 = pneg %p88
        $region54: #{tpu_custom_call.1} parent=47 // pred_check_branch
          %405 = sbr.rel (%p403) target = $region56
        $region55: #{tpu_custom_call.1} parent=47 // pred_region
          %407 = dma.done [#allocation6], 16
        $region56: #{tpu_custom_call.1} parent=47 // pred_fallthru
          _
        // Predicated region
        $region57: #{tpu_custom_call.1} parent=47 // pred_check
          %p408 = pneg %p130
        $region58: #{tpu_custom_call.1} parent=47 // pred_check_branch
          %410 = sbr.rel (%p408) target = $region60
        $region59: #{tpu_custom_call.1} parent=47 // pred_region
          %412 = dma.done [#allocation6], 256
        $region60: #{tpu_custom_call.1} parent=47 // pred_fallthru
          _
        // Predicated region
        $region61: #{tpu_custom_call.1} parent=47 // pred_check
          %p413 = pneg %p177
        $region62: #{tpu_custom_call.1} parent=47 // pred_check_branch
          %415 = sbr.rel (%p413) target = $region64
        $region63: #{tpu_custom_call.1} parent=47 // pred_region
          %417 = dma.done [#allocation9], 128
        $region64: #{tpu_custom_call.1} parent=47 // pred_fallthru
          _
        // Predicated region
        $region65: #{tpu_custom_call.1} parent=47 // pred_check
          %p418 = pneg %p203
        $region66: #{tpu_custom_call.1} parent=47 // pred_check_branch
          %420 = sbr.rel (%p418) target = $region68
        $region67: #{tpu_custom_call.1} parent=47 // pred_region
          %422 = dma.done [#allocation9], 128
        $region68: #{tpu_custom_call.1} parent=47 // pred_fallthru
          _
        %s423 = sand.u32 %s54, 1
        %s424 = scalar_lea.sflag [#allocation3], %s423
        %s425 = sand.u32 %s54, 1
        %s426 = smul.addr %s425, 8
        %s427 = scalar_lea.vmem [#allocation2], %s426
        %p428 = pneg %p67
        %p429 = pneg %p64
        %p430 = pneg %p88
        %p431 = pneg %p85
        %p432 = pneg %p109
        %p433 = pneg %p106
        %p434 = pneg %p130
        %p435 = pneg %p127
        %p436 = pneg %p151
        %p437 = pneg %p148
        %p438 = pneg %p177
        %p439 = pneg %p174
        %p440 = pneg %p203
        %p441 = pneg %p200
        %p442 = pneg %p231
        %p443 = pneg %p228
        %s444 = sand.u32 %s218, 1
        %s445 = scalar_lea.sflag [#allocation4], %s444
        %s446 = sand.u32 %s218, 1
        %s447 = smul.addr %s446, 16
        %s448 = scalar_lea.vmem [#allocation11], %s447
        %p449 = pneg %p259
        %p450 = pneg %p256
        %s451 = sand.u32 %s32, 1
        %s452 = scalar_lea.sflag [#allocation13], %s451
        %s453 = sand.u32 %s246, 1
        %s454 = smul.addr %s453, 16
        %s455 = scalar_lea.vmem [#allocation12], %s454
        %p456 = pneg %p287
        %p457 = pneg %p284
        %s458 = sand.u32 %s32, 1
        %s459 = scalar_lea.sflag [#allocation13], %s458
        %s460 = sand.u32 %s274, 1
        %s461 = smul.addr %s460, 16
        %s462 = scalar_lea.vmem [#allocation14], %s461
        %v464 = vld [vmem:[%s397] sm:$0xff]
        %v465 = vld [vmem:[#allocation5] sm:$0x1]
        %v466 = vld [vmem:[%s2] sm:$0x1]
        %vm467 = vcmask 261120
        %v468 = vsel %vm467, %v464, 0.0
        %469 = vadd.xlane.f32.xlu0 %v468
        %v470 = vpop.xlane.xlu0 %469
        %v471 = vrcp.pop 32.0
        %v472 = vmul.f32 32.0, %v471
        %v473 = vsub.f32 1.0, %v472
        %v474 = vmul.f32 %v471, %v473
        %v475 = vadd.f32 %v471, %v474
        %vm476 = vweird.f32 %v471
        %v477 = vsel %vm476, %v471, %v475
        %v478 = vmul.f32 %v470, %v477
        %v479 = vsub.f32 %v464, %v478
        %v480 = vmul.f32 %v479, %v479
        %v481 = vsel %vm467, %v480, 0.0
        %482 = vadd.xlane.f32.xlu0 %v481
        %v483 = vpop.xlane.xlu0 %482
        %v484 = vmul.f32 %v483, %v477
        %v485 = vadd.f32 %v484, 1e-05
        %v486 = vrsqrt.pop %v485
        %v487 = vmul.f32 %v486, %v485
        %v488 = vmul.f32 %v487, %v486
        %v489 = vmul.f32 0.5, %v488
        %v490 = vsub.f32 1.5, %v489
        %v491 = vmul.f32 %v486, %v490
        %vm492 = vweird.f32 %v485
        %vm493 = vweird.f32 %v486
        %vm494 = vmor %vm492, %vm493
        %v495 = vsel %vm494, %v486, %v491
        %v496 = vmul.f32 %v479, %v495
        %v498 = vperm.slane %v465, 0
        %v500 = vmul.f32 %v496, %v498
        %v502 = vperm.slane %v466, 0
        %v504 = vadd.f32 %v500, %v502
        %v505 = vpack.c.bf16 %v504, %v504
        %v506 = vld [vmem:[#allocation7] sm:$0xf]
        %v507 = vld [vmem:[#allocation7 + $0x4] sm:$0xf]
        %v508 = vld [vmem:[#allocation7 + $0x8] sm:$0xf]
        %v509 = vld [vmem:[#allocation7 + $0xc] sm:$0xf]
        %v510 = vld [vmem:[%s4] sm:$0x1]
        %v512 = vperm.slane %v510, 0
        %v518 = vunpack.c.l.b16 %v506
        %v519 = vunpack.c.l.b16 %v507
        %v520 = vunpack.c.l.b16 %v508
        %v521 = vunpack.c.l.b16 %v509
        %v522 = vpack.c.b16 %v519, %v518
        %v523 = vpack.c.b16 %v521, %v520
        %v527 = vsel %vm467, %v505, 0
        %529 = vmatpush.bf16.msra.mxu0 0
        %530 = vmatpush.bf16.msra.mxu0 0
        %531 = vmatpush.bf16.msra.mxu0 0
        %532 = vmatpush.bf16.msra.mxu0 0
        %533 = vmatpush.bf16.msra.mxu0 0
        %534 = vmatpush.bf16.msra.mxu0 0
        %535 = vmatpush.bf16.msra.mxu0 %v523
        %536 = vmatpush.bf16.msra.mxu0 %v522
        %537 = vmatmul.bf16.gmra.mxu0 %v527
        %v538 = vpop.f32.mrf.mxu0
        %v539 = vadd.f32 %v512, %v538
        %v540 = vpop.f32.mrf.mxu0
        %541 = vdwg.mxu0
        %v542 = vld [vmem:[#allocation8] sm:$0xff]
        %v543 = vld [vmem:[#allocation10] sm:$0xff]
        %v544 = vmul.f32 %v539, %v542
        %546 = vrot.lane.b32.xlu0 %v539, 124
        %v547 = vpop.permute.xlu0 %546
        %549 = vrot.lane.b32.xlu0 %v539, 4
        %v550 = vpop.permute.xlu0 %549
        %vm552 = vcmask 31744
        %v553 = vsel %vm552, %v547, %v550
        %v554 = vmul.f32 %v553, %v543
        %v555 = vadd.f32 %v544, %v554
        %v556 = vpack.c.bf16 %v555, %v555
        %vm557 = vcmask 60416
        %558 = vst.msk [vmem:[%s448] sm:$0xf] %vm557, %v556
        %560 = vrot.lane.b32.xlu0 %v542, 8
        %v561 = vpop.permute.xlu0 %560
        %v563 = vmul.f32 %v539, %v561
        %564 = vrot.lane.b32.xlu0 %v539, 116
        %v565 = vpop.permute.xlu0 %564
        %v567 = vsel %vm552, %v565, %v547
        %v568 = vmul.f32 %v567, %v543
        %570 = vrot.lane.b32.xlu0 %v568, 8
        %v571 = vpop.permute.xlu0 %570
        %v573 = vadd.f32 %v563, %v571
        %v574 = vpack.c.bf16 %v573, %v573
        %576 = vrot.lane.b32.xlu0 %v574, 120
        %v577 = vpop.permute.xlu0 %576
        %579 = vst.msk [vmem:[%s455] sm:$0xf] %vm557, %v577
        %v580 = vpack.c.bf16 %v539, %v539
        %582 = vrot.lane.b32.xlu0 %v580, 112
        %v583 = vpop.permute.xlu0 %582
        %585 = vst.msk [vmem:[%s462] sm:$0xf] %vm557, %v583
        %586 = vrot.lane.b32.xlu0 %v542, 24
        %v587 = vpop.permute.xlu0 %586
        %v589 = vmul.f32 %v539, %v587
        %590 = vrot.lane.b32.xlu0 %v539, 100
        %v591 = vpop.permute.xlu0 %590
        %593 = vrot.lane.b32.xlu0 %v539, 108
        %v594 = vpop.permute.xlu0 %593
        %v596 = vsel %vm552, %v591, %v594
        %v597 = vmul.f32 %v596, %v543
        %599 = vrot.lane.b32.xlu0 %v597, 24
        %v600 = vpop.permute.xlu0 %599
        %v602 = vadd.f32 %v589, %v600
        %v603 = vpack.c.bf16 %v602, %v602
        %605 = vrot.lane.b32.xlu0 %v603, 104
        %v606 = vpop.permute.xlu0 %605
        %s608 = scalar_lea.vmem %s448, 4 [#allocation11]
        %609 = vst.msk [vmem:[%s608] sm:$0xf] %vm557, %v606
        %610 = vrot.lane.b32.xlu0 %v542, 32
        %v611 = vpop.permute.xlu0 %610
        %v613 = vmul.f32 %v539, %v611
        %614 = vrot.lane.b32.xlu0 %v539, 92
        %v615 = vpop.permute.xlu0 %614
        %v617 = vsel %vm552, %v615, %v591
        %v618 = vmul.f32 %v617, %v543
        %620 = vrot.lane.b32.xlu0 %v618, 32
        %v621 = vpop.permute.xlu0 %620
        %v623 = vadd.f32 %v613, %v621
        %v624 = vpack.c.bf16 %v623, %v623
        %626 = vrot.lane.b32.xlu0 %v624, 96
        %v627 = vpop.permute.xlu0 %626
        %s629 = scalar_lea.vmem %s455, 4 [#allocation12]
        %630 = vst.msk [vmem:[%s629] sm:$0xf] %vm557, %v627
        %631 = vrot.lane.b32.xlu0 %v580, 88
        %v632 = vpop.permute.xlu0 %631
        %s634 = scalar_lea.vmem %s462, 4 [#allocation14]
        %635 = vst.msk [vmem:[%s634] sm:$0xf] %vm557, %v632
        %636 = vrot.lane.b32.xlu0 %v542, 48
        %v637 = vpop.permute.xlu0 %636
        %v639 = vmul.f32 %v539, %v637
        %640 = vrot.lane.b32.xlu0 %v539, 76
        %v641 = vpop.permute.xlu0 %640
        %643 = vrot.lane.b32.xlu0 %v539, 84
        %v644 = vpop.permute.xlu0 %643
        %v646 = vsel %vm552, %v641, %v644
        %v647 = vmul.f32 %v646, %v543
        %649 = vrot.lane.b32.xlu0 %v647, 48
        %v650 = vpop.permute.xlu0 %649
        %v652 = vadd.f32 %v639, %v650
        %v653 = vpack.c.bf16 %v652, %v652
        %655 = vrot.lane.b32.xlu0 %v653, 80
        %v656 = vpop.permute.xlu0 %655
        %s658 = scalar_lea.vmem %s448, 8 [#allocation11]
        %659 = vst.msk [vmem:[%s658] sm:$0xf] %vm557, %v656
        %660 = vrot.lane.b32.xlu0 %v542, 56
        %v661 = vpop.permute.xlu0 %660
        %v663 = vmul.f32 %v539, %v661
        %664 = vrot.lane.b32.xlu0 %v539, 68
        %v665 = vpop.permute.xlu0 %664
        %v667 = vsel %vm552, %v665, %v641
        %v668 = vmul.f32 %v667, %v543
        %670 = vrot.lane.b32.xlu0 %v668, 56
        %v671 = vpop.permute.xlu0 %670
        %v673 = vadd.f32 %v663, %v671
        %v674 = vpack.c.bf16 %v673, %v673
        %676 = vrot.lane.b32.xlu0 %v674, 72
        %v677 = vpop.permute.xlu0 %676
        %s679 = scalar_lea.vmem %s455, 8 [#allocation12]
        %680 = vst.msk [vmem:[%s679] sm:$0xf] %vm557, %v677
        %681 = vrot.lane.b32.xlu0 %v580, 64
        %v682 = vpop.permute.xlu0 %681
        %s684 = scalar_lea.vmem %s462, 8 [#allocation14]
        %685 = vst.msk [vmem:[%s684] sm:$0xf] %vm557, %v682
        %686 = vrot.lane.b32.xlu0 %v542, 72
        %v687 = vpop.permute.xlu0 %686
        %v689 = vmul.f32 %v539, %v687
        %690 = vrot.lane.b32.xlu0 %v539, 52
        %v691 = vpop.permute.xlu0 %690
        %693 = vrot.lane.b32.xlu0 %v539, 60
        %v694 = vpop.permute.xlu0 %693
        %v696 = vsel %vm552, %v691, %v694
        %v697 = vmul.f32 %v696, %v543
        %699 = vrot.lane.b32.xlu0 %v697, 72
        %v700 = vpop.permute.xlu0 %699
        %v702 = vadd.f32 %v689, %v700
        %v703 = vpack.c.bf16 %v702, %v702
        %705 = vrot.lane.b32.xlu0 %v703, 56
        %v706 = vpop.permute.xlu0 %705
        %s708 = scalar_lea.vmem %s448, 12 [#allocation11]
        %709 = vst.msk [vmem:[%s708] sm:$0xf] %vm557, %v706
        %710 = vrot.lane.b32.xlu0 %v542, 80
        %v711 = vpop.permute.xlu0 %710
        %v713 = vmul.f32 %v539, %v711
        %714 = vrot.lane.b32.xlu0 %v539, 44
        %v715 = vpop.permute.xlu0 %714
        %v717 = vsel %vm552, %v715, %v691
        %v718 = vmul.f32 %v717, %v543
        %720 = vrot.lane.b32.xlu0 %v718, 80
        %v721 = vpop.permute.xlu0 %720
        %v723 = vadd.f32 %v713, %v721
        %v724 = vpack.c.bf16 %v723, %v723
        %726 = vrot.lane.b32.xlu0 %v724, 48
        %v727 = vpop.permute.xlu0 %726
        %s729 = scalar_lea.vmem %s455, 12 [#allocation12]
        %730 = vst.msk [vmem:[%s729] sm:$0xf] %vm557, %v727
        %731 = vrot.lane.b32.xlu0 %v580, 40
        %v732 = vpop.permute.xlu0 %731
        %s734 = scalar_lea.vmem %s462, 12 [#allocation14]
        %735 = vst.msk [vmem:[%s734] sm:$0xf] %vm557, %v732
        %s736 = sand.u32 %s218, 1
        %s737 = scalar_lea.sflag [#allocation4], %s736
        %s738 = sand.u32 %s218, 1
        %s739 = smul.addr %s738, 16
        %s740 = scalar_lea.vmem [#allocation11], %s739
        %s741 = sand.u32 %s32, 1
        %s742 = scalar_lea.sflag [#allocation13], %s741
        %s743 = sand.u32 %s246, 1
        %s744 = smul.addr %s743, 16
        %s745 = scalar_lea.vmem [#allocation12], %s744
        %s746 = sand.u32 %s32, 1
        %s747 = scalar_lea.sflag [#allocation13], %s746
        %s748 = sand.u32 %s274, 1
        %s749 = smul.addr %s748, 16
        %s750 = scalar_lea.vmem [#allocation14], %s749
        // Predicated region
        $region69: #{tpu_custom_call.1} parent=47 // pred_check
          %p751 = pneg %p228
        $region70: #{tpu_custom_call.1} parent=47 // pred_check_branch
          %753 = sbr.rel (%p751) target = $region72
        $region71: #{tpu_custom_call.1} parent=47 // pred_region
          %755 = vsyncadd %s737, 0
          %s756 = smul.addr %s36, 4
          %s757 = sadd.s32 %s37, %s756
          %s758 = smul.addr %s757, 4
          %s759 = scalar_lea.hbm %s7, %s758
          %s760 = sshll.u32 %s740, 4
          %s761 = int_to_ptr.vmem [resolvable:$true] %s760
          %s762 = sshll.u32 %s759, 4
          %s763 = int_to_ptr.hbm [resolvable:$true] %s762
          %768 = dma.vmem_to_hbm [thread:$0]  %s761, 256, %s763, %s737, 64, 64, 4
        $region72: #{tpu_custom_call.1} parent=47 // pred_fallthru
          _
        // Predicated region
        $region73: #{tpu_custom_call.1} parent=47 // pred_check
          %p769 = pneg %p256
        $region74: #{tpu_custom_call.1} parent=47 // pred_check_branch
          %771 = sbr.rel (%p769) target = $region76
        $region75: #{tpu_custom_call.1} parent=47 // pred_region
          %773 = vsyncadd %s742, 0
          %s774 = smul.addr %s36, 4
          %s775 = sadd.s32 %s37, %s774
          %s776 = smul.addr %s775, 4
          %s777 = scalar_lea.hbm %s8, %s776
          %s778 = sshll.u32 %s745, 4
          %s779 = int_to_ptr.vmem [resolvable:$true] %s778
          %s780 = sshll.u32 %s777, 4
          %s781 = int_to_ptr.hbm [resolvable:$true] %s780
          %786 = dma.vmem_to_hbm [thread:$0]  %s779, 256, %s781, %s742, 64, 64, 4
        $region76: #{tpu_custom_call.1} parent=47 // pred_fallthru
          _
        // Predicated region
        $region77: #{tpu_custom_call.1} parent=47 // pred_check
          %p787 = pneg %p284
        $region78: #{tpu_custom_call.1} parent=47 // pred_check_branch
          %789 = sbr.rel (%p787) target = $region80
        $region79: #{tpu_custom_call.1} parent=47 // pred_region
          %791 = vsyncadd %s747, 0
          %s792 = smul.addr %s36, 4
          %s793 = sadd.s32 %s37, %s792
          %s794 = smul.addr %s793, 4
          %s795 = scalar_lea.hbm %s9, %s794
          %s796 = sshll.u32 %s750, 4
          %s797 = int_to_ptr.vmem [resolvable:$true] %s796
          %s798 = sshll.u32 %s795, 4
          %s799 = int_to_ptr.hbm [resolvable:$true] %s798
          %804 = dma.vmem_to_hbm [thread:$0]  %s797, 256, %s799, %s747, 64, 64, 4
        $region80: #{tpu_custom_call.1} parent=47 // pred_fallthru
          _
      $region48: #{tpu_custom_call.1} parent=5 // pred_fallthru
        _
      %p805 = scmp.le.s32.totalorder 2, %s27
      // Predicated region
      $region81: #{tpu_custom_call.1} parent=5 // pred_check
        %p806 = pneg %p805
      $region82: #{tpu_custom_call.1} parent=5 // pred_check_branch
        %808 = sbr.rel (%p806) target = $region84
      $region83: #{tpu_custom_call.1} parent=5 // pred_region
        %s809 = ssub.s32 %s27, 2
        // Predicated region
        $region85: #{tpu_custom_call.1} parent=83 // pred_check
          %p810 = pneg %p234
        $region86: #{tpu_custom_call.1} parent=83 // pred_check_branch
          %812 = sbr.rel (%p810) target = $region88
        $region87: #{tpu_custom_call.1} parent=83 // pred_region
          %s813 = sand.u32 %s219, 1
          %s814 = scalar_lea.sflag [#allocation4], %s813
          %s815 = sand.u32 %s219, 1
          %s816 = smul.addr %s815, 16
          %s817 = scalar_lea.vmem [#allocation11], %s816
          %819 = dma.done %s814, 256
        $region88: #{tpu_custom_call.1} parent=83 // pred_fallthru
          _
        // Predicated region
        $region89: #{tpu_custom_call.1} parent=83 // pred_check
          %p820 = pneg %p262
        $region90: #{tpu_custom_call.1} parent=83 // pred_check_branch
          %822 = sbr.rel (%p820) target = $region92
        $region91: #{tpu_custom_call.1} parent=83 // pred_region
          %s823 = sand.u32 %s33, 1
          %s824 = scalar_lea.sflag [#allocation13], %s823
          %s825 = sand.u32 %s247, 1
          %s826 = smul.addr %s825, 16
          %s827 = scalar_lea.vmem [#allocation12], %s826
          %829 = dma.done %s824, 256
        $region92: #{tpu_custom_call.1} parent=83 // pred_fallthru
          _
        // Predicated region
        $region93: #{tpu_custom_call.1} parent=83 // pred_check
          %p830 = pneg %p290
        $region94: #{tpu_custom_call.1} parent=83 // pred_check_branch
          %832 = sbr.rel (%p830) target = $region96
        $region95: #{tpu_custom_call.1} parent=83 // pred_region
          %s833 = sand.u32 %s33, 1
          %s834 = scalar_lea.sflag [#allocation13], %s833
          %s835 = sand.u32 %s275, 1
          %s836 = smul.addr %s835, 16
          %s837 = scalar_lea.vmem [#allocation14], %s836
          %839 = dma.done %s834, 256
        $region96: #{tpu_custom_call.1} parent=83 // pred_fallthru
          _
      $region84: #{tpu_custom_call.1} parent=5 // pred_fallthru
        _
    $region6: #{tpu_custom_call.1} parent=1 // loop_footer
      %s31 = sadd.s32 1, %s27
    $region7: #{tpu_custom_call.1} parent=1 // loop_footer_branch
      %26 = sbr.rel target = $region3
    $region8: #{tpu_custom_call.1} parent=1 // loop_exit
      _
    %840 = vsyncpa [#allocation3], 1
    %s841 = scalar_lea.sflag [#allocation3], 1
    %842 = vsyncpa %s841, 1
    %843 = vsyncpa [#allocation6], 1
    %844 = vsyncpa [#allocation9], 1
    %845 = vsyncpa [#allocation4], 1
    %s846 = scalar_lea.sflag [#allocation4], 1
    %847 = vsyncpa %s846, 1
    %848 = vsyncpa [#allocation13], 1
    %s849 = scalar_lea.sflag [#allocation13], 1
    %850 = vsyncpa %s849, 1

</llo_original>
